<compile_context>
chip_gen: v5e
topology: v5e:2x2
jax: 0.10.0
libtpu: 0.0.40
codegen_flags: <defaults>
</compile_context>

<pallas_src>
import functools
import math

import jax
import jax.numpy as jnp
from jax import lax
from jax.experimental import pallas as pl
from jax.experimental.pallas import tpu as pltpu


def _leaky_relu(x, slope=0.01):
    return jnp.where(x >= 0, x, slope * x)


def _fused_layers_kernel(x_ref, wq_ref, bq_ref, wk_ref, bk_ref, wv_ref, bv_ref,
                         wo_ref, bo_ref, lnw_ref, lnb_ref, o_ref, acc_ref, *,
                         n_head, eps, fast):
    layer = pl.program_id(1)
    n_layers = pl.num_programs(1)

    bblk, T, D = x_ref.shape
    M = bblk * T
    att_dim = wq_ref.shape[2]
    v_dim = wv_ref.shape[2]
    hd = att_dim // n_head
    hdv = v_dim // n_head

    mxu_dtype = jnp.bfloat16 if fast else jnp.float32

    # Activation resident in VMEM scratch across the (arbitrary) layer axis.
    @pl.when(layer == 0)
    def _():
        acc_ref[...] = x_ref[...].astype(jnp.float32)

    x2 = acc_ref[...].reshape(M, D)          # (M, D) f32 activation (leading-dim merge)
    x_m = x2.astype(mxu_dtype)

    # Q/K/V projections (combined projection was split wrapper-side; 1/scale is
    # already folded into Wq/bq).  f32 accumulation on the MXU.
    q = _leaky_relu(jnp.dot(x_m, wq_ref[0], preferred_element_type=jnp.float32)
                    + bq_ref[0])                                   # (M, att_dim)
    k = _leaky_relu(jnp.dot(x_m, wk_ref[0], preferred_element_type=jnp.float32)
                    + bk_ref[0])                                   # (M, att_dim)
    v = _leaky_relu(jnp.dot(x_m, wv_ref[0], preferred_element_type=jnp.float32)
                    + bv_ref[0])                                   # (M, v_dim)

    # Head-batched attention, per batch element inside the block (sublane slices
    # only; no per-head lane slicing and no lane-axis concatenate).
    att_rows = []
    for bi in range(bblk):
        sl = slice(bi * T, (bi + 1) * T)
        qh = jnp.swapaxes(q[sl].reshape(T, n_head, hd), 0, 1)      # (H, T, hd)
        kh = jnp.swapaxes(k[sl].reshape(T, n_head, hd), 0, 1)      # (H, T, hd)
        vh = jnp.swapaxes(v[sl].reshape(T, n_head, hdv), 0, 1)     # (H, T, hdv)

        s = jnp.einsum('htd,hsd->hts', qh, kh,
                       preferred_element_type=jnp.float32)         # (H, T, T)
        s = s - jnp.max(s, axis=-1, keepdims=True)                 # stable softmax
        p = jnp.exp(s)
        denom = jnp.sum(p, axis=-1, keepdims=True)
        if fast:
            p = p * pl.reciprocal(denom, approx=True)              # EUP slot
        else:
            p = p / denom
        oh = jnp.einsum('hts,hsv->htv',
                        p.astype(mxu_dtype), vh.astype(mxu_dtype),
                        preferred_element_type=jnp.float32)        # (H, T, hdv)
        att_rows.append(jnp.swapaxes(oh, 0, 1).reshape(T, v_dim))  # (T, v_dim)
    att = att_rows[0] if bblk == 1 else jnp.concatenate(att_rows, axis=0)

    # Output projection + residual + LayerNorm (all elementwise math in f32).
    proj = jnp.dot(att.astype(mxu_dtype), wo_ref[0],
                   preferred_element_type=jnp.float32)             # (M, D)
    y = x2 + _leaky_relu(proj + bo_ref[0])
    mean = jnp.mean(y, axis=-1, keepdims=True)
    var = jnp.mean((y - mean) ** 2, axis=-1, keepdims=True)
    y = (y - mean) * lax.rsqrt(var + eps)
    y = y * lnw_ref[0] + lnb_ref[0]

    acc_ref[...] = y.reshape(bblk, T, D)

    @pl.when(layer == n_layers - 1)
    def _():
        o_ref[...] = acc_ref[...].astype(o_ref.dtype)


def _pick_batch_block(B, T):
    """Largest divisor of B that keeps >=2 batch blocks (megacore) and a modest M."""
    best = 1
    for d in range(1, B + 1):
        if B % d:
            continue
        if B >= 2 and B // d < 2:
            continue
        if d * T > 512:
            continue
        best = d
    return best


def self_attention_forward(x, params, n_head, *, fast=True):
    """Full SelfAttention stack in ONE pallas_call (layers fused)."""
    B, T, D = x.shape
    L = len(params)
    att_dim = (D // n_head) * n_head
    inv_scale = 1.0 / float((D // n_head) ** 0.5)
    w_dtype = jnp.bfloat16 if fast else jnp.float32

    # Stack per-layer weights along a leading layer axis; split the combined
    # projection into Q/K/V; fold 1/scale into Wq/bq (exact w.r.t. leaky_relu).
    wq = jnp.stack([p[0][:, :att_dim] for p in params]) * inv_scale        # (L, D, att)
    wk = jnp.stack([p[0][:, att_dim:2 * att_dim] for p in params])         # (L, D, att)
    wv = jnp.stack([p[0][:, 2 * att_dim:] for p in params])                # (L, D, v)
    bq = jnp.stack([p[1][:att_dim] for p in params])[:, None, :] * inv_scale
    bk = jnp.stack([p[1][att_dim:2 * att_dim] for p in params])[:, None, :]
    bv = jnp.stack([p[1][2 * att_dim:] for p in params])[:, None, :]
    wo = jnp.stack([p[2] for p in params])                                 # (L, v, D)
    bo = jnp.stack([p[3] for p in params])[:, None, :]
    lnw = jnp.stack([p[4] for p in params])[:, None, :]
    lnb = jnp.stack([p[5] for p in params])[:, None, :]
    # bf16 MXU inputs (weights cast wrapper-side: halves weight DMA + VMEM).
    wq, wk, wv, wo = (w.astype(w_dtype) for w in (wq, wk, wv, wo))

    bblk = _pick_batch_block(B, T)
    nb = B // bblk

    kernel = functools.partial(_fused_layers_kernel,
                               n_head=n_head, eps=1e-5, fast=fast)

    def wspec(shape):
        # Weight index depends only on the layer axis; default double-buffering
        # prefetches layer l+1 weights while layer l computes.
        return pl.BlockSpec((1,) + shape[1:], lambda b, l: (l, 0, 0))

    return pl.pallas_call(
        kernel,
        out_shape=jax.ShapeDtypeStruct((B, T, D), x.dtype),
        grid=(nb, L),
        in_specs=[
            pl.BlockSpec((bblk, T, D), lambda b, l: (b, 0, 0)),   # x (per batch block)
            wspec(wq.shape), wspec(bq.shape),
            wspec(wk.shape), wspec(bk.shape),
            wspec(wv.shape), wspec(bv.shape),
            wspec(wo.shape), wspec(bo.shape),
            wspec(lnw.shape), wspec(lnb.shape),
        ],
        out_specs=pl.BlockSpec((bblk, T, D), lambda b, l: (b, 0, 0)),
        scratch_shapes=[pltpu.VMEM((bblk, T, D), jnp.float32)],   # resident activation
        compiler_params=pltpu.CompilerParams(
            dimension_semantics=("parallel", "arbitrary")),
    )(x, wq, bq, wk, bk, wv, bv, wo, bo, lnw, lnb)


def init_params(key, n_hidden, n_layer, n_head):
    """Deterministic parameter init mirroring the PyTorch module's shapes."""
    att_dim = (n_hidden // n_head) * n_head
    v_dim = (n_hidden // 2) * n_head
    C = 2 * att_dim + v_dim
    params = []
    for i in range(n_layer):
        k = jax.random.fold_in(key, i)
        k1, k2, k3, k4 = jax.random.split(k, 4)
        std_cp = 0.1 * math.sqrt(2.0 / (n_hidden + C))             # xavier_normal(gain=0.1)
        wcp = std_cp * jax.random.normal(k1, (n_hidden, C), jnp.float32)
        bcp = jax.random.uniform(k2, (C,), jnp.float32, -1.0, 1.0) / math.sqrt(n_hidden)
        std_out = 0.1 * math.sqrt(2.0 / (v_dim + n_hidden))
        wout = std_out * jax.random.normal(k3, (v_dim, n_hidden), jnp.float32)
        bout = jax.random.uniform(k4, (n_hidden,), jnp.float32, -1.0, 1.0) / math.sqrt(v_dim)
        lnw = jnp.ones((n_hidden,), jnp.float32)
        lnb = jnp.zeros((n_hidden,), jnp.float32)
        params.append((wcp, bcp, wout, bout, lnw, lnb))
    return params


def reference_forward(x, params, n_head):
    """Pure-JAX reference reproducing the PyTorch forward exactly."""
    for (wcp, bcp, wout, bout, lnw, lnb) in params:
        B, T, D = x.shape
        att_dim = (D // n_head) * n_head
        hd = att_dim // n_head
        cp = _leaky_relu(x @ wcp + bcp)
        q = cp[..., :att_dim].reshape(B, T, n_head, hd)
        k = cp[..., att_dim:2 * att_dim].reshape(B, T, n_head, hd)
        v = cp[..., 2 * att_dim:]
        hdv = v.shape[-1] // n_head
        v = v.reshape(B, T, n_head, hdv)
        sim = jnp.einsum('bthd,bshd->bhts', q, k) / (D // n_head) ** 0.5
        p = jax.nn.softmax(sim, axis=-1)
        att = jnp.einsum('bhts,bshv->bthv', p, v).reshape(B, T, -1)
        y = x + _leaky_relu(att @ wout + bout)
        mean = y.mean(-1, keepdims=True)
        var = ((y - mean) ** 2).mean(-1, keepdims=True)
        x = (y - mean) / jnp.sqrt(var + 1e-5) * lnw + lnb
    return x


if __name__ == "__main__":
    # Small shapes consistent with the module: n_hidden divisible by n_head=6 and by 2.
    B, T = 2, 8
    n_hidden, n_layer, n_head = 48, 2, 6

    key = jax.random.PRNGKey(0)
    kx, kp = jax.random.split(key)
    x = jax.random.normal(kx, (B, T, n_hidden), jnp.float32)
    params = init_params(kp, n_hidden, n_layer, n_head)

    ref = reference_forward(x, params, n_head)

    # Strict-precision config (f32 MXU inputs, exact softmax divide): tight check.
    out_f32 = jax.block_until_ready(self_attention_forward(x, params, n_head, fast=False))
    assert out_f32.shape == (B, T, n_hidden)
    assert jnp.allclose(out_f32, ref, rtol=1e-4, atol=1e-4), "f32 kernel mismatch vs reference"

    # Fast config (bf16 MXU inputs + approx-reciprocal softmax): looser tolerance.
    out_fast = jax.block_until_ready(self_attention_forward(x, params, n_head, fast=True))
    assert out_fast.shape == (B, T, n_hidden)
    assert jnp.allclose(out_fast, ref, rtol=2e-2, atol=2e-2), "fast kernel mismatch vs reference"

    print("KERNEL_OK")
</pallas_src>

<mosaic_0001>
module attributes {stable_mosaic.version = 11 : i64} {
  func.func @_fused_layers_kernel(%arg0: i32, %arg1: i32, %arg2: memref<1x8x48xf32, #tpu.memory_space<vmem>>, %arg3: memref<1x48x48xf32, #tpu.memory_space<vmem>>, %arg4: memref<1x1x48xf32, #tpu.memory_space<vmem>>, %arg5: memref<1x48x48xf32, #tpu.memory_space<vmem>>, %arg6: memref<1x1x48xf32, #tpu.memory_space<vmem>>, %arg7: memref<1x48x144xf32, #tpu.memory_space<vmem>>, %arg8: memref<1x1x144xf32, #tpu.memory_space<vmem>>, %arg9: memref<1x144x48xf32, #tpu.memory_space<vmem>>, %arg10: memref<1x1x48xf32, #tpu.memory_space<vmem>>, %arg11: memref<1x1x48xf32, #tpu.memory_space<vmem>>, %arg12: memref<1x1x48xf32, #tpu.memory_space<vmem>>, %arg13: memref<1x8x48xf32, #tpu.memory_space<vmem>>, %arg14: memref<1x8x48xf32, #tpu.memory_space<vmem>>) attributes {dimension_semantics = [#tpu.dimension_semantics<parallel>, #tpu.dimension_semantics<arbitrary>], iteration_bounds = array<i64: 2, 2>, scalar_prefetch = 0 : i64, scratch_operands = 1 : i64, tpu.core_type = #tpu.core_type<tc>, window_params = [{transform_indices = @transform_0, window_bounds = array<i64: 1, 8, 48>}, {transform_indices = @transform_1, window_bounds = array<i64: 1, 48, 48>}, {transform_indices = @transform_2, window_bounds = array<i64: 1, 1, 48>}, {transform_indices = @transform_3, window_bounds = array<i64: 1, 48, 48>}, {transform_indices = @transform_4, window_bounds = array<i64: 1, 1, 48>}, {transform_indices = @transform_5, window_bounds = array<i64: 1, 48, 144>}, {transform_indices = @transform_6, window_bounds = array<i64: 1, 1, 144>}, {transform_indices = @transform_7, window_bounds = array<i64: 1, 144, 48>}, {transform_indices = @transform_8, window_bounds = array<i64: 1, 1, 48>}, {transform_indices = @transform_9, window_bounds = array<i64: 1, 1, 48>}, {transform_indices = @transform_10, window_bounds = array<i64: 1, 1, 48>}, {transform_indices = @transform_11, window_bounds = array<i64: 1, 8, 48>}]} {
    %c0_i32 = arith.constant 0 : i32
    %0 = arith.cmpi eq, %arg1, %c0_i32 : i32
    %1 = arith.extui %0 : i1 to i32
    %c0_i32_0 = arith.constant 0 : i32
    %2 = arith.cmpi ne, %1, %c0_i32_0 : i32
    scf.if %2 {
      %c0_57 = arith.constant 0 : index
      %c0_58 = arith.constant 0 : index
      %c0_59 = arith.constant 0 : index
      %104 = vector.load %arg2[%c0_57, %c0_58, %c0_59] : memref<1x8x48xf32, #tpu.memory_space<vmem>>, vector<1x8x48xf32>
      %c0_60 = arith.constant 0 : index
      %c0_61 = arith.constant 0 : index
      %c0_62 = arith.constant 0 : index
      %105 = vector.load %arg14[%c0_60, %c0_61, %c0_62] : memref<1x8x48xf32, #tpu.memory_space<vmem>>, vector<1x8x48xf32>
      tpu.vector_store %arg14[%c0_60, %c0_61, %c0_62], %104 {strides = array<i32>} : memref<1x8x48xf32, #tpu.memory_space<vmem>>, vector<1x8x48xf32>,
    } else {
    }
    %c0 = arith.constant 0 : index
    %c0_1 = arith.constant 0 : index
    %c0_2 = arith.constant 0 : index
    %3 = vector.load %arg14[%c0, %c0_1, %c0_2] : memref<1x8x48xf32, #tpu.memory_space<vmem>>, vector<1x8x48xf32>
    %4 = vector.shape_cast %3 : vector<1x8x48xf32> to vector<8x48xf32>
    %c0_3 = arith.constant 0 : index
    %c0_4 = arith.constant 0 : index
    %c0_5 = arith.constant 0 : index
    %5 = vector.load %arg3[%c0_3, %c0_4, %c0_5] : memref<1x48x48xf32, #tpu.memory_space<vmem>>, vector<1x48x48xf32>
    %6 = vector.shape_cast %5 : vector<1x48x48xf32> to vector<48x48xf32>
    %cst = arith.constant dense<0.000000e+00> : vector<8x48xf32>
    %7 = tpu.matmul %4, %6, %cst {dimension_numbers = #tpu.dot_dimension_numbers<[1], [0], [0], [1], [0, 0, 1, 1], [], []>} : vector<8x48xf32>, vector<48x48xf32>, vector<8x48xf32> -> vector<8x48xf32>
    %c0_6 = arith.constant 0 : index
    %c0_7 = arith.constant 0 : index
    %c0_8 = arith.constant 0 : index
    %8 = vector.load %arg4[%c0_6, %c0_7, %c0_8] : memref<1x1x48xf32, #tpu.memory_space<vmem>>, vector<1x1x48xf32>
    %9 = vector.shape_cast %8 : vector<1x1x48xf32> to vector<1x48xf32>
    %10 = vector.broadcast %9 : vector<1x48xf32> to vector<8x48xf32>
    %11 = arith.addf %7, %10 : vector<8x48xf32>
    %cst_9 = arith.constant 0.000000e+00 : f32
    %12 = vector.broadcast %cst_9 : f32 to vector<8x48xf32>
    %13 = arith.cmpf oge, %11, %12 : vector<8x48xf32>
    %cst_10 = arith.constant 0.00999999977 : f32
    %14 = vector.broadcast %cst_10 : f32 to vector<8x48xf32>
    %15 = arith.mulf %14, %11 : vector<8x48xf32>
    %16 = arith.select %13, %11, %15 : vector<8x48xi1>, vector<8x48xf32>
    %c0_11 = arith.constant 0 : index
    %c0_12 = arith.constant 0 : index
    %c0_13 = arith.constant 0 : index
    %17 = vector.load %arg5[%c0_11, %c0_12, %c0_13] : memref<1x48x48xf32, #tpu.memory_space<vmem>>, vector<1x48x48xf32>
    %18 = vector.shape_cast %17 : vector<1x48x48xf32> to vector<48x48xf32>
    %cst_14 = arith.constant dense<0.000000e+00> : vector<8x48xf32>
    %19 = tpu.matmul %4, %18, %cst_14 {dimension_numbers = #tpu.dot_dimension_numbers<[1], [0], [0], [1], [0, 0, 1, 1], [], []>} : vector<8x48xf32>, vector<48x48xf32>, vector<8x48xf32> -> vector<8x48xf32>
    %c0_15 = arith.constant 0 : index
    %c0_16 = arith.constant 0 : index
    %c0_17 = arith.constant 0 : index
    %20 = vector.load %arg6[%c0_15, %c0_16, %c0_17] : memref<1x1x48xf32, #tpu.memory_space<vmem>>, vector<1x1x48xf32>
    %21 = vector.shape_cast %20 : vector<1x1x48xf32> to vector<1x48xf32>
    %22 = vector.broadcast %21 : vector<1x48xf32> to vector<8x48xf32>
    %23 = arith.addf %19, %22 : vector<8x48xf32>
    %cst_18 = arith.constant 0.000000e+00 : f32
    %24 = vector.broadcast %cst_18 : f32 to vector<8x48xf32>
    %25 = arith.cmpf oge, %23, %24 : vector<8x48xf32>
    %cst_19 = arith.constant 0.00999999977 : f32
    %26 = vector.broadcast %cst_19 : f32 to vector<8x48xf32>
    %27 = arith.mulf %26, %23 : vector<8x48xf32>
    %28 = arith.select %25, %23, %27 : vector<8x48xi1>, vector<8x48xf32>
    %c0_20 = arith.constant 0 : index
    %c0_21 = arith.constant 0 : index
    %c0_22 = arith.constant 0 : index
    %29 = vector.load %arg7[%c0_20, %c0_21, %c0_22] : memref<1x48x144xf32, #tpu.memory_space<vmem>>, vector<1x48x144xf32>
    %30 = vector.shape_cast %29 : vector<1x48x144xf32> to vector<48x144xf32>
    %cst_23 = arith.constant dense<0.000000e+00> : vector<8x144xf32>
    %31 = tpu.matmul %4, %30, %cst_23 {dimension_numbers = #tpu.dot_dimension_numbers<[1], [0], [0], [1], [0, 0, 1, 1], [], []>} : vector<8x48xf32>, vector<48x144xf32>, vector<8x144xf32> -> vector<8x144xf32>
    %c0_24 = arith.constant 0 : index
    %c0_25 = arith.constant 0 : index
    %c0_26 = arith.constant 0 : index
    %32 = vector.load %arg8[%c0_24, %c0_25, %c0_26] : memref<1x1x144xf32, #tpu.memory_space<vmem>>, vector<1x1x144xf32>
    %33 = vector.shape_cast %32 : vector<1x1x144xf32> to vector<1x144xf32>
    %34 = vector.broadcast %33 : vector<1x144xf32> to vector<8x144xf32>
    %35 = arith.addf %31, %34 : vector<8x144xf32>
    %cst_27 = arith.constant 0.000000e+00 : f32
    %36 = vector.broadcast %cst_27 : f32 to vector<8x144xf32>
    %37 = arith.cmpf oge, %35, %36 : vector<8x144xf32>
    %cst_28 = arith.constant 0.00999999977 : f32
    %38 = vector.broadcast %cst_28 : f32 to vector<8x144xf32>
    %39 = arith.mulf %38, %35 : vector<8x144xf32>
    %40 = arith.select %37, %35, %39 : vector<8x144xi1>, vector<8x144xf32>
    %41 = vector.shape_cast %16 : vector<8x48xf32> to vector<8x6x8xf32>
    %42 = tpu.transpose %41, [1, 0, 2] : vector<8x6x8xf32> -> vector<6x8x8xf32>
    %43 = vector.shape_cast %28 : vector<8x48xf32> to vector<8x6x8xf32>
    %44 = tpu.transpose %43, [1, 0, 2] : vector<8x6x8xf32> -> vector<6x8x8xf32>
    %45 = vector.shape_cast %40 : vector<8x144xf32> to vector<8x6x24xf32>
    %46 = tpu.transpose %45, [1, 0, 2] : vector<8x6x24xf32> -> vector<6x8x24xf32>
    "tpu.trace_start"() <{level = 10 : i32, message = "htd,hsd->hts"}> : () -> ()
    %cst_29 = arith.constant dense<0.000000e+00> : vector<6x8x8xf32>
    %47 = tpu.matmul %42, %44, %cst_29 {dimension_numbers = #tpu.dot_dimension_numbers<[2], [2], [1], [1], [0, 0, 0, 1, 1, 1], [0], [0]>} : vector<6x8x8xf32>, vector<6x8x8xf32>, vector<6x8x8xf32> -> vector<6x8x8xf32>
    "tpu.trace_stop"() : () -> ()
    %cst_30 = arith.constant dense<0xFF800000> : vector<6x8xf32>
    %48 = vector.multi_reduction <maximumf>, %47, %cst_30 [2] : vector<6x8x8xf32> to vector<6x8xf32>
    %49 = vector.shape_cast %48 : vector<6x8xf32> to vector<6x8x1xf32>
    %50 = vector.broadcast %49 : vector<6x8x1xf32> to vector<6x8x8xf32>
    %51 = arith.subf %47, %50 : vector<6x8x8xf32>
    %52 = math.exp %51 : vector<6x8x8xf32>
    %cst_31 = arith.constant dense<0.000000e+00> : vector<6x8xf32>
    %53 = vector.multi_reduction <add>, %52, %cst_31 [2] : vector<6x8x8xf32> to vector<6x8xf32>
    %54 = vector.shape_cast %53 : vector<6x8xf32> to vector<6x8x1xf32>
    %55 = vector.broadcast %54 : vector<6x8x1xf32> to vector<6x8x8xf32>
    %56 = arith.divf %52, %55 : vector<6x8x8xf32>
    "tpu.trace_start"() <{level = 10 : i32, message = "hts,hsv->htv"}> : () -> ()
    %cst_32 = arith.constant dense<0.000000e+00> : vector<6x8x24xf32>
    %57 = tpu.matmul %56, %46, %cst_32 {dimension_numbers = #tpu.dot_dimension_numbers<[2], [1], [1], [2], [0, 0, 0, 1, 1, 2], [0], [0]>} : vector<6x8x8xf32>, vector<6x8x24xf32>, vector<6x8x24xf32> -> vector<6x8x24xf32>
    "tpu.trace_stop"() : () -> ()
    %58 = tpu.transpose %57, [1, 0, 2] : vector<6x8x24xf32> -> vector<8x6x24xf32>
    %59 = vector.shape_cast %58 : vector<8x6x24xf32> to vector<8x144xf32>
    %c0_33 = arith.constant 0 : index
    %c0_34 = arith.constant 0 : index
    %c0_35 = arith.constant 0 : index
    %60 = vector.load %arg9[%c0_33, %c0_34, %c0_35] : memref<1x144x48xf32, #tpu.memory_space<vmem>>, vector<1x144x48xf32>
    %61 = vector.shape_cast %60 : vector<1x144x48xf32> to vector<144x48xf32>
    %cst_36 = arith.constant dense<0.000000e+00> : vector<8x48xf32>
    %62 = tpu.matmul %59, %61, %cst_36 {dimension_numbers = #tpu.dot_dimension_numbers<[1], [0], [0], [1], [0, 0, 1, 1], [], []>} : vector<8x144xf32>, vector<144x48xf32>, vector<8x48xf32> -> vector<8x48xf32>
    %c0_37 = arith.constant 0 : index
    %c0_38 = arith.constant 0 : index
    %c0_39 = arith.constant 0 : index
    %63 = vector.load %arg10[%c0_37, %c0_38, %c0_39] : memref<1x1x48xf32, #tpu.memory_space<vmem>>, vector<1x1x48xf32>
    %64 = vector.shape_cast %63 : vector<1x1x48xf32> to vector<1x48xf32>
    %65 = vector.broadcast %64 : vector<1x48xf32> to vector<8x48xf32>
    %66 = arith.addf %62, %65 : vector<8x48xf32>
    %cst_40 = arith.constant 0.000000e+00 : f32
    %67 = vector.broadcast %cst_40 : f32 to vector<8x48xf32>
    %68 = arith.cmpf oge, %66, %67 : vector<8x48xf32>
    %cst_41 = arith.constant 0.00999999977 : f32
    %69 = vector.broadcast %cst_41 : f32 to vector<8x48xf32>
    %70 = arith.mulf %69, %66 : vector<8x48xf32>
    %71 = arith.select %68, %66, %70 : vector<8x48xi1>, vector<8x48xf32>
    %72 = arith.addf %4, %71 : vector<8x48xf32>
    %cst_42 = arith.constant dense<0.000000e+00> : vector<8xf32>
    %73 = vector.multi_reduction <add>, %72, %cst_42 [1] : vector<8x48xf32> to vector<8xf32>
    %74 = vector.shape_cast %73 : vector<8xf32> to vector<8x1xf32>
    %cst_43 = arith.constant 4.800000e+01 : f32
    %75 = vector.broadcast %cst_43 : f32 to vector<8x1xf32>
    %76 = arith.divf %74, %75 : vector<8x1xf32>
    %77 = vector.broadcast %76 : vector<8x1xf32> to vector<8x48xf32>
    %78 = arith.subf %72, %77 : vector<8x48xf32>
    %79 = arith.mulf %78, %78 : vector<8x48xf32>
    %cst_44 = arith.constant dense<0.000000e+00> : vector<8xf32>
    %80 = vector.multi_reduction <add>, %79, %cst_44 [1] : vector<8x48xf32> to vector<8xf32>
    %81 = vector.shape_cast %80 : vector<8xf32> to vector<8x1xf32>
    %cst_45 = arith.constant 4.800000e+01 : f32
    %82 = vector.broadcast %cst_45 : f32 to vector<8x1xf32>
    %83 = arith.divf %81, %82 : vector<8x1xf32>
    %84 = vector.broadcast %76 : vector<8x1xf32> to vector<8x48xf32>
    %85 = arith.subf %72, %84 : vector<8x48xf32>
    %cst_46 = arith.constant 9.99999974E-6 : f32
    %86 = vector.broadcast %cst_46 : f32 to vector<8x1xf32>
    %87 = arith.addf %83, %86 : vector<8x1xf32>
    %88 = math.rsqrt %87 : vector<8x1xf32>
    %89 = vector.broadcast %88 : vector<8x1xf32> to vector<8x48xf32>
    %90 = arith.mulf %85, %89 : vector<8x48xf32>
    %c0_47 = arith.constant 0 : index
    %c0_48 = arith.constant 0 : index
    %c0_49 = arith.constant 0 : index
    %91 = vector.load %arg11[%c0_47, %c0_48, %c0_49] : memref<1x1x48xf32, #tpu.memory_space<vmem>>, vector<1x1x48xf32>
    %92 = vector.shape_cast %91 : vector<1x1x48xf32> to vector<1x48xf32>
    %93 = vector.broadcast %92 : vector<1x48xf32> to vector<8x48xf32>
    %94 = arith.mulf %90, %93 : vector<8x48xf32>
    %c0_50 = arith.constant 0 : index
    %c0_51 = arith.constant 0 : index
    %c0_52 = arith.constant 0 : index
    %95 = vector.load %arg12[%c0_50, %c0_51, %c0_52] : memref<1x1x48xf32, #tpu.memory_space<vmem>>, vector<1x1x48xf32>
    %96 = vector.shape_cast %95 : vector<1x1x48xf32> to vector<1x48xf32>
    %97 = vector.broadcast %96 : vector<1x48xf32> to vector<8x48xf32>
    %98 = arith.addf %94, %97 : vector<8x48xf32>
    %99 = vector.shape_cast %98 : vector<8x48xf32> to vector<1x8x48xf32>
    %c0_53 = arith.constant 0 : index
    %c0_54 = arith.constant 0 : index
    %c0_55 = arith.constant 0 : index
    %100 = vector.load %arg14[%c0_53, %c0_54, %c0_55] : memref<1x8x48xf32, #tpu.memory_space<vmem>>, vector<1x8x48xf32>
    tpu.vector_store %arg14[%c0_53, %c0_54, %c0_55], %99 {strides = array<i32>} : memref<1x8x48xf32, #tpu.memory_space<vmem>>, vector<1x8x48xf32>,
    %c1_i32 = arith.constant 1 : i32
    %101 = arith.cmpi eq, %arg1, %c1_i32 : i32
    %102 = arith.extui %101 : i1 to i32
    %c0_i32_56 = arith.constant 0 : i32
    %103 = arith.cmpi ne, %102, %c0_i32_56 : i32
    scf.if %103 {
      %c0_57 = arith.constant 0 : index
      %c0_58 = arith.constant 0 : index
      %c0_59 = arith.constant 0 : index
      %104 = vector.load %arg14[%c0_57, %c0_58, %c0_59] : memref<1x8x48xf32, #tpu.memory_space<vmem>>, vector<1x8x48xf32>
      %c0_60 = arith.constant 0 : index
      %c0_61 = arith.constant 0 : index
      %c0_62 = arith.constant 0 : index
      %105 = vector.load %arg13[%c0_60, %c0_61, %c0_62] : memref<1x8x48xf32, #tpu.memory_space<vmem>>, vector<1x8x48xf32>
      tpu.vector_store %arg13[%c0_60, %c0_61, %c0_62], %104 {strides = array<i32>} : memref<1x8x48xf32, #tpu.memory_space<vmem>>, vector<1x8x48xf32>,
    } else {
    }
    return
  }
  func.func @transform_0(%arg0: i32, %arg1: i32) -> (i32, i32, i32) {
    %c0_i32 = arith.constant 0 : i32
    %c0_i32_0 = arith.constant 0 : i32
    %c0_i32_1 = arith.constant 0 : i32
    return %arg0, %c0_i32, %c0_i32_0 : i32, i32, i32
  }
  func.func @transform_1(%arg0: i32, %arg1: i32) -> (i32, i32, i32) {
    %c0_i32 = arith.constant 0 : i32
    %c0_i32_0 = arith.constant 0 : i32
    %c0_i32_1 = arith.constant 0 : i32
    return %arg1, %c0_i32, %c0_i32_0 : i32, i32, i32
  }
  func.func @transform_2(%arg0: i32, %arg1: i32) -> (i32, i32, i32) {
    %c0_i32 = arith.constant 0 : i32
    %c0_i32_0 = arith.constant 0 : i32
    %c0_i32_1 = arith.constant 0 : i32
    return %arg1, %c0_i32, %c0_i32_0 : i32, i32, i32
  }
  func.func @transform_3(%arg0: i32, %arg1: i32) -> (i32, i32, i32) {
    %c0_i32 = arith.constant 0 : i32
    %c0_i32_0 = arith.constant 0 : i32
    %c0_i32_1 = arith.constant 0 : i32
    return %arg1, %c0_i32, %c0_i32_0 : i32, i32, i32
  }
  func.func @transform_4(%arg0: i32, %arg1: i32) -> (i32, i32, i32) {
    %c0_i32 = arith.constant 0 : i32
    %c0_i32_0 = arith.constant 0 : i32
    %c0_i32_1 = arith.constant 0 : i32
    return %arg1, %c0_i32, %c0_i32_0 : i32, i32, i32
  }
  func.func @transform_5(%arg0: i32, %arg1: i32) -> (i32, i32, i32) {
    %c0_i32 = arith.constant 0 : i32
    %c0_i32_0 = arith.constant 0 : i32
    %c0_i32_1 = arith.constant 0 : i32
    return %arg1, %c0_i32, %c0_i32_0 : i32, i32, i32
  }
  func.func @transform_6(%arg0: i32, %arg1: i32) -> (i32, i32, i32) {
    %c0_i32 = arith.constant 0 : i32
    %c0_i32_0 = arith.constant 0 : i32
    %c0_i32_1 = arith.constant 0 : i32
    return %arg1, %c0_i32, %c0_i32_0 : i32, i32, i32
  }
  func.func @transform_7(%arg0: i32, %arg1: i32) -> (i32, i32, i32) {
    %c0_i32 = arith.constant 0 : i32
    %c0_i32_0 = arith.constant 0 : i32
    %c0_i32_1 = arith.constant 0 : i32
    return %arg1, %c0_i32, %c0_i32_0 : i32, i32, i32
  }
  func.func @transform_8(%arg0: i32, %arg1: i32) -> (i32, i32, i32) {
    %c0_i32 = arith.constant 0 : i32
    %c0_i32_0 = arith.constant 0 : i32
    %c0_i32_1 = arith.constant 0 : i32
    return %arg1, %c0_i32, %c0_i32_0 : i32, i32, i32
  }
  func.func @transform_9(%arg0: i32, %arg1: i32) -> (i32, i32, i32) {
    %c0_i32 = arith.constant 0 : i32
    %c0_i32_0 = arith.constant 0 : i32
    %c0_i32_1 = arith.constant 0 : i32
    return %arg1, %c0_i32, %c0_i32_0 : i32, i32, i32
  }
  func.func @transform_10(%arg0: i32, %arg1: i32) -> (i32, i32, i32) {
    %c0_i32 = arith.constant 0 : i32
    %c0_i32_0 = arith.constant 0 : i32
    %c0_i32_1 = arith.constant 0 : i32
    return %arg1, %c0_i32, %c0_i32_0 : i32, i32, i32
  }
  func.func @transform_11(%arg0: i32, %arg1: i32) -> (i32, i32, i32) {
    %c0_i32 = arith.constant 0 : i32
    %c0_i32_0 = arith.constant 0 : i32
    %c0_i32_1 = arith.constant 0 : i32
    return %arg0, %c0_i32, %c0_i32_0 : i32, i32, i32
  }
}

</mosaic_0001>

<llo_original>
// kernel: tpu_custom_call.1
$region0: #{tpu_custom_call.1}
  #allocation0 [shape = 'u32[]', space=smem, size = 0x4, offset = 0x4, fixed_abs, tag = 'smem constant byte address 0x4 - core index']
  #allocation1 [shape = 'u32[72,128]{1,0:T(1,128)}', space=vmem, size = 0x9000, scoped, tag = 'internal scratch']
  #allocation2 [shape = 'f32[1,8,48]{2,1,0:T(8,128)}', space=vmem, size = 0x1000, scoped, tag = 'scratch operand']
  %s0 = inlined_call_operand.vmem [shape: f32[2,8,48], index: 0, kind: input, shape index: {}]
  %s1 = inlined_call_operand.vmem [shape: f32[2,48,48], index: 1, kind: input, shape index: {}]
  %s2 = inlined_call_operand.vmem [shape: f32[2,1,48], index: 2, kind: input, shape index: {}]
  %s3 = inlined_call_operand.vmem [shape: f32[2,48,48], index: 3, kind: input, shape index: {}]
  %s4 = inlined_call_operand.vmem [shape: f32[2,1,48], index: 4, kind: input, shape index: {}]
  %s5 = inlined_call_operand.vmem [shape: f32[2,48,144], index: 5, kind: input, shape index: {}]
  %s6 = inlined_call_operand.vmem [shape: f32[2,1,144], index: 6, kind: input, shape index: {}]
  %s7 = inlined_call_operand.vmem [shape: f32[2,144,48], index: 7, kind: input, shape index: {}]
  %s8 = inlined_call_operand.vmem [shape: f32[2,1,48], index: 8, kind: input, shape index: {}]
  %s9 = inlined_call_operand.vmem [shape: f32[2,1,48], index: 9, kind: input, shape index: {}]
  %s10 = inlined_call_operand.vmem [shape: f32[2,1,48], index: 10, kind: input, shape index: {}]
  %s11 = inlined_call_operand.hbm [shape: f32[2,8,48], index: 11, kind: output, shape index: {}]
  %s12 = sld [smem:[#allocation0]]
  $region85: #{tpu_custom_call.1} parent=0
    _
  %s14 = ssub.s32 1, %s12
  %s15 = scalar_select 0, %s14, %s12
  $region1: #{tpu_custom_call.1} parent=0
    #allocation3 [shape = 'u8[8192]{0}', space=vmem, size = 0x2000, scoped, tag = 'output window, operand 0']
    #allocation4 [shape = 's32[2]{0}', space=sflag, size = 0x8, scoped, tag = 'scoped memory for tpu_custom_call.1']
    %16 = vsyncpa [#allocation4], 0
    %s17 = scalar_lea.sflag [#allocation4], 1
    %18 = vsyncpa %s17, 0
    loop: start=0, step=1, limit=6
    $region2: #{tpu_custom_call.1} parent=1 // loop_pre_header
      _
    $region3: #{tpu_custom_call.1} parent=1 // loop_header
      %s20 = sphi 0, %s24
      %p21 = scmp.ge.s32.totalorder %s20, 6
      %s27 = sphi 0, %s39
      %s28 = sphi 0, %s35
      %s29 = sphi 0, %s27
      %s30 = sphi 0, %s28
      %s31 = sphi 0, %s29
      %s32 = sphi 0, %s30
      %s42 = sphi 0, %s44
      %s45 = sphi 0, %s42
      %s46 = sphi 0, %s45
      %s62 = sphi 0, %s46
      %s68 = sphi 0, %s70
      %s71 = sphi 0, %s68
      %s72 = sphi 0, %s71
      %s88 = sphi 0, %s72
      %s94 = sphi 0, %s96
      %s97 = sphi 0, %s94
      %s98 = sphi 0, %s97
      %s114 = sphi 0, %s98
      %s120 = sphi 0, %s122
      %s123 = sphi 0, %s120
      %s124 = sphi 0, %s123
      %s140 = sphi 0, %s124
      %s146 = sphi 0, %s148
      %s149 = sphi 0, %s146
      %s150 = sphi 0, %s149
      %s166 = sphi 0, %s150
      %s172 = sphi 0, %s174
      %s175 = sphi 0, %s172
      %s176 = sphi 0, %s175
      %s192 = sphi 0, %s176
      %s198 = sphi 0, %s200
      %s201 = sphi 0, %s198
      %s202 = sphi 0, %s201
      %s218 = sphi 0, %s202
      %s224 = sphi 0, %s226
      %s227 = sphi 0, %s224
      %s228 = sphi 0, %s227
      %s244 = sphi 0, %s228
      %s250 = sphi 0, %s252
      %s253 = sphi 0, %s250
      %s254 = sphi 0, %s253
      %s270 = sphi 0, %s254
      %s276 = sphi 0, %s278
      %s279 = sphi 0, %s276
      %s280 = sphi 0, %s279
      %s296 = sphi 0, %s280
      %s302 = sphi 0, %s304
      %s305 = sphi 0, %s302
      %s306 = sphi 0, %s305
      %s322 = sphi 0, %s306
      %s328 = sphi 0, %s330
      %s331 = sphi 0, %s328
      %s332 = sphi 0, %s331
      %s348 = sphi 0, %s332
    $region4: #{tpu_custom_call.1} parent=1 // loop_header_branch
      %23 = sbr.rel (%p21) target = $region8
    $region5: #{tpu_custom_call.1} parent=1 // loop_body
      %s25 = ssub.s32 %s20, 1
      %s26 = ssub.s32 %s20, 2
      %s33 = sadd.s32 1, %s28
      %p34 = scmp.ge.s32.totalorder %s33, 2
      %s35 = scalar_select %p34, 0, %s33
      %s36 = sadd.s32 1, %s27
      %s37 = scalar_select %p34, %s36, %s27
      %p38 = scmp.ge.s32.totalorder %s37, 2
      %s39 = scalar_select %p38, 0, %s37
      %s40 = ssub.s32 %s27, %s39
      %p41 = scmp.eq.s32.totalorder %s40, 0
      %s43 = sadd.s32 %s42, 1
      %s44 = scalar_select %p41, %s42, %s43
      %p47 = pneg %p41
      %p48 = scmp.eq.s32.totalorder %s20, 3
      %p49 = por %p47, %p48
      %p50 = scmp.ne.s32.totalorder %s42, %s45
      %p51 = scmp.eq.s32.totalorder %s20, 0
      %p52 = por %p50, %p51
      %p53 = scmp.ne.s32.totalorder %s42, %s45
      %p54 = scmp.eq.s32.totalorder %s25, 3
      %p55 = por %p53, %p54
      %p56 = scmp.ne.s32.totalorder %s45, %s46
      %p57 = scmp.eq.s32.totalorder %s25, 0
      %p58 = por %p56, %p57
      %p59 = scmp.ne.s32.totalorder %s45, %s46
      %p60 = scmp.eq.s32.totalorder %s26, 3
      %p61 = por %p59, %p60
      %p63 = scmp.ne.s32.totalorder %s46, %s62
      %p64 = scmp.eq.s32.totalorder %s26, 0
      %p65 = por %p63, %p64
      %s66 = ssub.s32 %s28, %s35
      %p67 = scmp.eq.s32.totalorder %s66, 0
      %s69 = sadd.s32 %s68, 1
      %s70 = scalar_select %p67, %s68, %s69
      %p73 = pneg %p67
      %p74 = scmp.eq.s32.totalorder %s20, 3
      %p75 = por %p73, %p74
      %p76 = scmp.ne.s32.totalorder %s68, %s71
      %p77 = scmp.eq.s32.totalorder %s20, 0
      %p78 = por %p76, %p77
      %p79 = scmp.ne.s32.totalorder %s68, %s71
      %p80 = scmp.eq.s32.totalorder %s25, 3
      %p81 = por %p79, %p80
      %p82 = scmp.ne.s32.totalorder %s71, %s72
      %p83 = scmp.eq.s32.totalorder %s25, 0
      %p84 = por %p82, %p83
      %p85 = scmp.ne.s32.totalorder %s71, %s72
      %p86 = scmp.eq.s32.totalorder %s26, 3
      %p87 = por %p85, %p86
      %p89 = scmp.ne.s32.totalorder %s72, %s88
      %p90 = scmp.eq.s32.totalorder %s26, 0
      %p91 = por %p89, %p90
      %s92 = ssub.s32 %s28, %s35
      %p93 = scmp.eq.s32.totalorder %s92, 0
      %s95 = sadd.s32 %s94, 1
      %s96 = scalar_select %p93, %s94, %s95
      %p99 = pneg %p93
      %p100 = scmp.eq.s32.totalorder %s20, 3
      %p101 = por %p99, %p100
      %p102 = scmp.ne.s32.totalorder %s94, %s97
      %p103 = scmp.eq.s32.totalorder %s20, 0
      %p104 = por %p102, %p103
      %p105 = scmp.ne.s32.totalorder %s94, %s97
      %p106 = scmp.eq.s32.totalorder %s25, 3
      %p107 = por %p105, %p106
      %p108 = scmp.ne.s32.totalorder %s97, %s98
      %p109 = scmp.eq.s32.totalorder %s25, 0
      %p110 = por %p108, %p109
      %p111 = scmp.ne.s32.totalorder %s97, %s98
      %p112 = scmp.eq.s32.totalorder %s26, 3
      %p113 = por %p111, %p112
      %p115 = scmp.ne.s32.totalorder %s98, %s114
      %p116 = scmp.eq.s32.totalorder %s26, 0
      %p117 = por %p115, %p116
      %s118 = ssub.s32 %s28, %s35
      %p119 = scmp.eq.s32.totalorder %s118, 0
      %s121 = sadd.s32 %s120, 1
      %s122 = scalar_select %p119, %s120, %s121
      %p125 = pneg %p119
      %p126 = scmp.eq.s32.totalorder %s20, 3
      %p127 = por %p125, %p126
      %p128 = scmp.ne.s32.totalorder %s120, %s123
      %p129 = scmp.eq.s32.totalorder %s20, 0
      %p130 = por %p128, %p129
      %p131 = scmp.ne.s32.totalorder %s120, %s123
      %p132 = scmp.eq.s32.totalorder %s25, 3
      %p133 = por %p131, %p132
      %p134 = scmp.ne.s32.totalorder %s123, %s124
      %p135 = scmp.eq.s32.totalorder %s25, 0
      %p136 = por %p134, %p135
      %p137 = scmp.ne.s32.totalorder %s123, %s124
      %p138 = scmp.eq.s32.totalorder %s26, 3
      %p139 = por %p137, %p138
      %p141 = scmp.ne.s32.totalorder %s124, %s140
      %p142 = scmp.eq.s32.totalorder %s26, 0
      %p143 = por %p141, %p142
      %s144 = ssub.s32 %s28, %s35
      %p145 = scmp.eq.s32.totalorder %s144, 0
      %s147 = sadd.s32 %s146, 1
      %s148 = scalar_select %p145, %s146, %s147
      %p151 = pneg %p145
      %p152 = scmp.eq.s32.totalorder %s20, 3
      %p153 = por %p151, %p152
      %p154 = scmp.ne.s32.totalorder %s146, %s149
      %p155 = scmp.eq.s32.totalorder %s20, 0
      %p156 = por %p154, %p155
      %p157 = scmp.ne.s32.totalorder %s146, %s149
      %p158 = scmp.eq.s32.totalorder %s25, 3
      %p159 = por %p157, %p158
      %p160 = scmp.ne.s32.totalorder %s149, %s150
      %p161 = scmp.eq.s32.totalorder %s25, 0
      %p162 = por %p160, %p161
      %p163 = scmp.ne.s32.totalorder %s149, %s150
      %p164 = scmp.eq.s32.totalorder %s26, 3
      %p165 = por %p163, %p164
      %p167 = scmp.ne.s32.totalorder %s150, %s166
      %p168 = scmp.eq.s32.totalorder %s26, 0
      %p169 = por %p167, %p168
      %s170 = ssub.s32 %s28, %s35
      %p171 = scmp.eq.s32.totalorder %s170, 0
      %s173 = sadd.s32 %s172, 1
      %s174 = scalar_select %p171, %s172, %s173
      %p177 = pneg %p171
      %p178 = scmp.eq.s32.totalorder %s20, 3
      %p179 = por %p177, %p178
      %p180 = scmp.ne.s32.totalorder %s172, %s175
      %p181 = scmp.eq.s32.totalorder %s20, 0
      %p182 = por %p180, %p181
      %p183 = scmp.ne.s32.totalorder %s172, %s175
      %p184 = scmp.eq.s32.totalorder %s25, 3
      %p185 = por %p183, %p184
      %p186 = scmp.ne.s32.totalorder %s175, %s176
      %p187 = scmp.eq.s32.totalorder %s25, 0
      %p188 = por %p186, %p187
      %p189 = scmp.ne.s32.totalorder %s175, %s176
      %p190 = scmp.eq.s32.totalorder %s26, 3
      %p191 = por %p189, %p190
      %p193 = scmp.ne.s32.totalorder %s176, %s192
      %p194 = scmp.eq.s32.totalorder %s26, 0
      %p195 = por %p193, %p194
      %s196 = ssub.s32 %s28, %s35
      %p197 = scmp.eq.s32.totalorder %s196, 0
      %s199 = sadd.s32 %s198, 1
      %s200 = scalar_select %p197, %s198, %s199
      %p203 = pneg %p197
      %p204 = scmp.eq.s32.totalorder %s20, 3
      %p205 = por %p203, %p204
      %p206 = scmp.ne.s32.totalorder %s198, %s201
      %p207 = scmp.eq.s32.totalorder %s20, 0
      %p208 = por %p206, %p207
      %p209 = scmp.ne.s32.totalorder %s198, %s201
      %p210 = scmp.eq.s32.totalorder %s25, 3
      %p211 = por %p209, %p210
      %p212 = scmp.ne.s32.totalorder %s201, %s202
      %p213 = scmp.eq.s32.totalorder %s25, 0
      %p214 = por %p212, %p213
      %p215 = scmp.ne.s32.totalorder %s201, %s202
      %p216 = scmp.eq.s32.totalorder %s26, 3
      %p217 = por %p215, %p216
      %p219 = scmp.ne.s32.totalorder %s202, %s218
      %p220 = scmp.eq.s32.totalorder %s26, 0
      %p221 = por %p219, %p220
      %s222 = ssub.s32 %s28, %s35
      %p223 = scmp.eq.s32.totalorder %s222, 0
      %s225 = sadd.s32 %s224, 1
      %s226 = scalar_select %p223, %s224, %s225
      %p229 = pneg %p223
      %p230 = scmp.eq.s32.totalorder %s20, 3
      %p231 = por %p229, %p230
      %p232 = scmp.ne.s32.totalorder %s224, %s227
      %p233 = scmp.eq.s32.totalorder %s20, 0
      %p234 = por %p232, %p233
      %p235 = scmp.ne.s32.totalorder %s224, %s227
      %p236 = scmp.eq.s32.totalorder %s25, 3
      %p237 = por %p235, %p236
      %p238 = scmp.ne.s32.totalorder %s227, %s228
      %p239 = scmp.eq.s32.totalorder %s25, 0
      %p240 = por %p238, %p239
      %p241 = scmp.ne.s32.totalorder %s227, %s228
      %p242 = scmp.eq.s32.totalorder %s26, 3
      %p243 = por %p241, %p242
      %p245 = scmp.ne.s32.totalorder %s228, %s244
      %p246 = scmp.eq.s32.totalorder %s26, 0
      %p247 = por %p245, %p246
      %s248 = ssub.s32 %s28, %s35
      %p249 = scmp.eq.s32.totalorder %s248, 0
      %s251 = sadd.s32 %s250, 1
      %s252 = scalar_select %p249, %s250, %s251
      %p255 = pneg %p249
      %p256 = scmp.eq.s32.totalorder %s20, 3
      %p257 = por %p255, %p256
      %p258 = scmp.ne.s32.totalorder %s250, %s253
      %p259 = scmp.eq.s32.totalorder %s20, 0
      %p260 = por %p258, %p259
      %p261 = scmp.ne.s32.totalorder %s250, %s253
      %p262 = scmp.eq.s32.totalorder %s25, 3
      %p263 = por %p261, %p262
      %p264 = scmp.ne.s32.totalorder %s253, %s254
      %p265 = scmp.eq.s32.totalorder %s25, 0
      %p266 = por %p264, %p265
      %p267 = scmp.ne.s32.totalorder %s253, %s254
      %p268 = scmp.eq.s32.totalorder %s26, 3
      %p269 = por %p267, %p268
      %p271 = scmp.ne.s32.totalorder %s254, %s270
      %p272 = scmp.eq.s32.totalorder %s26, 0
      %p273 = por %p271, %p272
      %s274 = ssub.s32 %s28, %s35
      %p275 = scmp.eq.s32.totalorder %s274, 0
      %s277 = sadd.s32 %s276, 1
      %s278 = scalar_select %p275, %s276, %s277
      %p281 = pneg %p275
      %p282 = scmp.eq.s32.totalorder %s20, 3
      %p283 = por %p281, %p282
      %p284 = scmp.ne.s32.totalorder %s276, %s279
      %p285 = scmp.eq.s32.totalorder %s20, 0
      %p286 = por %p284, %p285
      %p287 = scmp.ne.s32.totalorder %s276, %s279
      %p288 = scmp.eq.s32.totalorder %s25, 3
      %p289 = por %p287, %p288
      %p290 = scmp.ne.s32.totalorder %s279, %s280
      %p291 = scmp.eq.s32.totalorder %s25, 0
      %p292 = por %p290, %p291
      %p293 = scmp.ne.s32.totalorder %s279, %s280
      %p294 = scmp.eq.s32.totalorder %s26, 3
      %p295 = por %p293, %p294
      %p297 = scmp.ne.s32.totalorder %s280, %s296
      %p298 = scmp.eq.s32.totalorder %s26, 0
      %p299 = por %p297, %p298
      %s300 = ssub.s32 %s28, %s35
      %p301 = scmp.eq.s32.totalorder %s300, 0
      %s303 = sadd.s32 %s302, 1
      %s304 = scalar_select %p301, %s302, %s303
      %p307 = pneg %p301
      %p308 = scmp.eq.s32.totalorder %s20, 3
      %p309 = por %p307, %p308
      %p310 = scmp.ne.s32.totalorder %s302, %s305
      %p311 = scmp.eq.s32.totalorder %s20, 0
      %p312 = por %p310, %p311
      %p313 = scmp.ne.s32.totalorder %s302, %s305
      %p314 = scmp.eq.s32.totalorder %s25, 3
      %p315 = por %p313, %p314
      %p316 = scmp.ne.s32.totalorder %s305, %s306
      %p317 = scmp.eq.s32.totalorder %s25, 0
      %p318 = por %p316, %p317
      %p319 = scmp.ne.s32.totalorder %s305, %s306
      %p320 = scmp.eq.s32.totalorder %s26, 3
      %p321 = por %p319, %p320
      %p323 = scmp.ne.s32.totalorder %s306, %s322
      %p324 = scmp.eq.s32.totalorder %s26, 0
      %p325 = por %p323, %p324
      %s326 = ssub.s32 %s27, %s39
      %p327 = scmp.eq.s32.totalorder %s326, 0
      %s329 = sadd.s32 %s328, 1
      %s330 = scalar_select %p327, %s328, %s329
      %p333 = pneg %p327
      %p334 = scmp.eq.s32.totalorder %s20, 3
      %p335 = por %p333, %p334
      %p336 = scmp.ne.s32.totalorder %s328, %s331
      %p337 = scmp.eq.s32.totalorder %s20, 0
      %p338 = por %p336, %p337
      %p339 = scmp.ne.s32.totalorder %s328, %s331
      %p340 = scmp.eq.s32.totalorder %s25, 3
      %p341 = por %p339, %p340
      %p342 = scmp.ne.s32.totalorder %s331, %s332
      %p343 = scmp.eq.s32.totalorder %s25, 0
      %p344 = por %p342, %p343
      %p345 = scmp.ne.s32.totalorder %s331, %s332
      %p346 = scmp.eq.s32.totalorder %s26, 3
      %p347 = por %p345, %p346
      %p349 = scmp.ne.s32.totalorder %s332, %s348
      %p350 = scmp.eq.s32.totalorder %s26, 0
      %p351 = por %p349, %p350
      %p352 = scmp.le.s32.totalorder 1, %s20
      %p353 = scmp.lt.s32.totalorder %s20, 5
      %p354 = pnand %p352, %p353
      %p355 = pneg %p354
      // Predicated region
      $region9: #{tpu_custom_call.1} parent=5 // pred_check
        _
      $region10: #{tpu_custom_call.1} parent=5 // pred_check_branch
        %357 = sbr.rel (%p354) target = $region12
      $region11: #{tpu_custom_call.1} parent=5 // pred_region
        %s358 = ssub.s32 %s20, 1
      $region12: #{tpu_custom_call.1} parent=5 // pred_fallthru
        _
      %p359 = scmp.lt.s32.totalorder %s20, 4
      // Predicated region
      $region13: #{tpu_custom_call.1} parent=5 // pred_check
        %p360 = pneg %p359
      $region14: #{tpu_custom_call.1} parent=5 // pred_check_branch
        %362 = sbr.rel (%p360) target = $region16
      $region15: #{tpu_custom_call.1} parent=5 // pred_region
        // Predicated region
        $region17: #{tpu_custom_call.1} parent=15 // pred_check
          %p363 = pneg %p52
        $region18: #{tpu_custom_call.1} parent=15 // pred_check_branch
          %365 = sbr.rel (%p363) target = $region20
        $region19: #{tpu_custom_call.1} parent=15 // pred_region
          %p366 = scmp.lt.s32.totalorder %s27, 1
          %s367 = scalar_select %p366, %s27, 1
          %s368 = smul.addr %s367, 8
          %s369 = scalar_lea.vmem %s0, %s368
        $region20: #{tpu_custom_call.1} parent=15 // pred_fallthru
          _
        // Predicated region
        $region21: #{tpu_custom_call.1} parent=15 // pred_check
          %p370 = pneg %p78
        $region22: #{tpu_custom_call.1} parent=15 // pred_check_branch
          %372 = sbr.rel (%p370) target = $region24
        $region23: #{tpu_custom_call.1} parent=15 // pred_region
          %p373 = scmp.lt.s32.totalorder %s28, 1
          %s374 = scalar_select %p373, %s28, 1
          %s375 = smul.addr %s374, 6
          %s376 = smul.addr %s375, 8
          %s377 = scalar_lea.vmem %s1, %s376
        $region24: #{tpu_custom_call.1} parent=15 // pred_fallthru
          _
        // Predicated region
        $region25: #{tpu_custom_call.1} parent=15 // pred_check
          %p378 = pneg %p104
        $region26: #{tpu_custom_call.1} parent=15 // pred_check_branch
          %380 = sbr.rel (%p378) target = $region28
        $region27: #{tpu_custom_call.1} parent=15 // pred_region
          %p381 = scmp.lt.s32.totalorder %s28, 1
          %s382 = scalar_select %p381, %s28, 1
          %s383 = scalar_lea.vmem %s2, %s382
        $region28: #{tpu_custom_call.1} parent=15 // pred_fallthru
          _
        // Predicated region
        $region29: #{tpu_custom_call.1} parent=15 // pred_check
          %p384 = pneg %p130
        $region30: #{tpu_custom_call.1} parent=15 // pred_check_branch
          %386 = sbr.rel (%p384) target = $region32
        $region31: #{tpu_custom_call.1} parent=15 // pred_region
          %p387 = scmp.lt.s32.totalorder %s28, 1
          %s388 = scalar_select %p387, %s28, 1
          %s389 = smul.addr %s388, 6
          %s390 = smul.addr %s389, 8
          %s391 = scalar_lea.vmem %s3, %s390
        $region32: #{tpu_custom_call.1} parent=15 // pred_fallthru
          _
        // Predicated region
        $region33: #{tpu_custom_call.1} parent=15 // pred_check
          %p392 = pneg %p156
        $region34: #{tpu_custom_call.1} parent=15 // pred_check_branch
          %394 = sbr.rel (%p392) target = $region36
        $region35: #{tpu_custom_call.1} parent=15 // pred_region
          %p395 = scmp.lt.s32.totalorder %s28, 1
          %s396 = scalar_select %p395, %s28, 1
          %s397 = scalar_lea.vmem %s4, %s396
        $region36: #{tpu_custom_call.1} parent=15 // pred_fallthru
          _
        // Predicated region
        $region37: #{tpu_custom_call.1} parent=15 // pred_check
          %p398 = pneg %p182
        $region38: #{tpu_custom_call.1} parent=15 // pred_check_branch
          %400 = sbr.rel (%p398) target = $region40
        $region39: #{tpu_custom_call.1} parent=15 // pred_region
          %p401 = scmp.lt.s32.totalorder %s28, 1
          %s402 = scalar_select %p401, %s28, 1
          %s403 = smul.addr %s402, 12
          %s404 = smul.addr %s403, 8
          %s405 = scalar_lea.vmem %s5, %s404
        $region40: #{tpu_custom_call.1} parent=15 // pred_fallthru
          _
        // Predicated region
        $region41: #{tpu_custom_call.1} parent=15 // pred_check
          %p406 = pneg %p208
        $region42: #{tpu_custom_call.1} parent=15 // pred_check_branch
          %408 = sbr.rel (%p406) target = $region44
        $region43: #{tpu_custom_call.1} parent=15 // pred_region
          %p409 = scmp.lt.s32.totalorder %s28, 1
          %s410 = scalar_select %p409, %s28, 1
          %s411 = smul.addr %s410, 2
          %s412 = scalar_lea.vmem %s6, %s411
        $region44: #{tpu_custom_call.1} parent=15 // pred_fallthru
          _
        // Predicated region
        $region45: #{tpu_custom_call.1} parent=15 // pred_check
          %p413 = pneg %p234
        $region46: #{tpu_custom_call.1} parent=15 // pred_check_branch
          %415 = sbr.rel (%p413) target = $region48
        $region47: #{tpu_custom_call.1} parent=15 // pred_region
          %p416 = scmp.lt.s32.totalorder %s28, 1
          %s417 = scalar_select %p416, %s28, 1
          %s418 = smul.addr %s417, 18
          %s419 = smul.addr %s418, 8
          %s420 = scalar_lea.vmem %s7, %s419
        $region48: #{tpu_custom_call.1} parent=15 // pred_fallthru
          _
        // Predicated region
        $region49: #{tpu_custom_call.1} parent=15 // pred_check
          %p421 = pneg %p260
        $region50: #{tpu_custom_call.1} parent=15 // pred_check_branch
          %423 = sbr.rel (%p421) target = $region52
        $region51: #{tpu_custom_call.1} parent=15 // pred_region
          %p424 = scmp.lt.s32.totalorder %s28, 1
          %s425 = scalar_select %p424, %s28, 1
          %s426 = scalar_lea.vmem %s8, %s425
        $region52: #{tpu_custom_call.1} parent=15 // pred_fallthru
          _
        // Predicated region
        $region53: #{tpu_custom_call.1} parent=15 // pred_check
          %p427 = pneg %p286
        $region54: #{tpu_custom_call.1} parent=15 // pred_check_branch
          %429 = sbr.rel (%p427) target = $region56
        $region55: #{tpu_custom_call.1} parent=15 // pred_region
          %p430 = scmp.lt.s32.totalorder %s28, 1
          %s431 = scalar_select %p430, %s28, 1
          %s432 = scalar_lea.vmem %s9, %s431
        $region56: #{tpu_custom_call.1} parent=15 // pred_fallthru
          _
        // Predicated region
        $region57: #{tpu_custom_call.1} parent=15 // pred_check
          %p433 = pneg %p312
        $region58: #{tpu_custom_call.1} parent=15 // pred_check_branch
          %435 = sbr.rel (%p433) target = $region60
        $region59: #{tpu_custom_call.1} parent=15 // pred_region
          %p436 = scmp.lt.s32.totalorder %s28, 1
          %s437 = scalar_select %p436, %s28, 1
          %s438 = scalar_lea.vmem %s10, %s437
        $region60: #{tpu_custom_call.1} parent=15 // pred_fallthru
          _
      $region16: #{tpu_custom_call.1} parent=5 // pred_fallthru
        _
      %p439 = scmp.le.s32.totalorder 1, %s20
      %p440 = scmp.lt.s32.totalorder %s20, 5
      %p441 = pnand %p439, %p440
      %p442 = pneg %p441
      // Predicated region
      $region61: #{tpu_custom_call.1} parent=5 // pred_check
        _
      $region62: #{tpu_custom_call.1} parent=5 // pred_check_branch
        %444 = sbr.rel (%p441) target = $region64
      $region63: #{tpu_custom_call.1} parent=5 // pred_region
        %s445 = ssub.s32 %s20, 1
        %p446 = scmp.lt.s32.totalorder %s29, 1
        %s447 = scalar_select %p446, %s29, 1
        %s448 = smul.addr %s447, 8
        %s449 = scalar_lea.vmem %s0, %s448
        %p450 = pneg %p58
        %p451 = pneg %p55
        %p452 = scmp.lt.s32.totalorder %s30, 1
        %s453 = scalar_select %p452, %s30, 1
        %s454 = smul.addr %s453, 6
        %s455 = smul.addr %s454, 8
        %s456 = scalar_lea.vmem %s1, %s455
        %p457 = pneg %p84
        %p458 = pneg %p81
        %p459 = scmp.lt.s32.totalorder %s30, 1
        %s460 = scalar_select %p459, %s30, 1
        %s461 = scalar_lea.vmem %s2, %s460
        %p462 = pneg %p110
        %p463 = pneg %p107
        %p464 = scmp.lt.s32.totalorder %s30, 1
        %s465 = scalar_select %p464, %s30, 1
        %s466 = smul.addr %s465, 6
        %s467 = smul.addr %s466, 8
        %s468 = scalar_lea.vmem %s3, %s467
        %p469 = pneg %p136
        %p470 = pneg %p133
        %p471 = scmp.lt.s32.totalorder %s30, 1
        %s472 = scalar_select %p471, %s30, 1
        %s473 = scalar_lea.vmem %s4, %s472
        %p474 = pneg %p162
        %p475 = pneg %p159
        %p476 = scmp.lt.s32.totalorder %s30, 1
        %s477 = scalar_select %p476, %s30, 1
        %s478 = smul.addr %s477, 12
        %s479 = smul.addr %s478, 8
        %s480 = scalar_lea.vmem %s5, %s479
        %p481 = pneg %p188
        %p482 = pneg %p185
        %p483 = scmp.lt.s32.totalorder %s30, 1
        %s484 = scalar_select %p483, %s30, 1
        %s485 = smul.addr %s484, 2
        %s486 = scalar_lea.vmem %s6, %s485
        %p487 = pneg %p214
        %p488 = pneg %p211
        %p489 = scmp.lt.s32.totalorder %s30, 1
        %s490 = scalar_select %p489, %s30, 1
        %s491 = smul.addr %s490, 18
        %s492 = smul.addr %s491, 8
        %s493 = scalar_lea.vmem %s7, %s492
        %p494 = pneg %p240
        %p495 = pneg %p237
        %p496 = scmp.lt.s32.totalorder %s30, 1
        %s497 = scalar_select %p496, %s30, 1
        %s498 = scalar_lea.vmem %s8, %s497
        %p499 = pneg %p266
        %p500 = pneg %p263
        %p501 = scmp.lt.s32.totalorder %s30, 1
        %s502 = scalar_select %p501, %s30, 1
        %s503 = scalar_lea.vmem %s9, %s502
        %p504 = pneg %p292
        %p505 = pneg %p289
        %p506 = scmp.lt.s32.totalorder %s30, 1
        %s507 = scalar_select %p506, %s30, 1
        %s508 = scalar_lea.vmem %s10, %s507
        %p509 = pneg %p318
        %p510 = pneg %p315
        %p511 = pneg %p344
        %p512 = pneg %p341
        %s513 = sand.u32 %s331, 1
        %s514 = scalar_lea.sflag [#allocation4], %s513
        %s515 = sand.u32 %s331, 1
        %s516 = smul.addr %s515, 8
        %s517 = scalar_lea.vmem [#allocation3], %s516
        %p518 = scmp.lt.s32.totalorder %s29, 1
        %s519 = scalar_select %p518, %s29, 1
        %s520 = smul.addr %s519, 8
        %s521 = scalar_lea.vmem %s0, %s520
        %p522 = scmp.lt.s32.totalorder %s30, 1
        %s523 = scalar_select %p522, %s30, 1
        %s524 = smul.addr %s523, 6
        %s525 = smul.addr %s524, 8
        %s526 = scalar_lea.vmem %s1, %s525
        %p527 = scmp.lt.s32.totalorder %s30, 1
        %s528 = scalar_select %p527, %s30, 1
        %s529 = scalar_lea.vmem %s2, %s528
        %p530 = scmp.lt.s32.totalorder %s30, 1
        %s531 = scalar_select %p530, %s30, 1
        %s532 = smul.addr %s531, 6
        %s533 = smul.addr %s532, 8
        %s534 = scalar_lea.vmem %s3, %s533
        %p535 = scmp.lt.s32.totalorder %s30, 1
        %s536 = scalar_select %p535, %s30, 1
        %s537 = scalar_lea.vmem %s4, %s536
        %p538 = scmp.lt.s32.totalorder %s30, 1
        %s539 = scalar_select %p538, %s30, 1
        %s540 = smul.addr %s539, 12
        %s541 = smul.addr %s540, 8
        %s542 = scalar_lea.vmem %s5, %s541
        %p543 = scmp.lt.s32.totalorder %s30, 1
        %s544 = scalar_select %p543, %s30, 1
        %s545 = smul.addr %s544, 2
        %s546 = scalar_lea.vmem %s6, %s545
        %p547 = scmp.lt.s32.totalorder %s30, 1
        %s548 = scalar_select %p547, %s30, 1
        %s549 = smul.addr %s548, 18
        %s550 = smul.addr %s549, 8
        %s551 = scalar_lea.vmem %s7, %s550
        %p552 = scmp.lt.s32.totalorder %s30, 1
        %s553 = scalar_select %p552, %s30, 1
        %s554 = scalar_lea.vmem %s8, %s553
        %p555 = scmp.lt.s32.totalorder %s30, 1
        %s556 = scalar_select %p555, %s30, 1
        %s557 = scalar_lea.vmem %s9, %s556
        %p558 = scmp.lt.s32.totalorder %s30, 1
        %s559 = scalar_select %p558, %s30, 1
        %s560 = scalar_lea.vmem %s10, %s559
        %p561 = scmp.eq.s32.totalorder %s30, 0
        // Predicated region
        $region65: #{tpu_custom_call.1} parent=63 // pred_check
          %p562 = pneg %p561
        $region66: #{tpu_custom_call.1} parent=63 // pred_check_branch
          %564 = sbr.rel (%p562) target = $region68
        $region67: #{tpu_custom_call.1} parent=63 // pred_region
          %v565 = vld [vmem:[%s521] sm:$0xff]
          %vm566 = vcmask 392192
          %567 = vst.msk [vmem:[#allocation2] sm:$0xff] %vm566, %v565
        $region68: #{tpu_custom_call.1} parent=63 // pred_fallthru
          _
        %v568 = vld [vmem:[#allocation2] sm:$0xff]
        %v569 = vld [vmem:[%s526] sm:$0xff]
        %v570 = vld [vmem:[%s526 + $0x8] sm:$0xff]
        %v571 = vld [vmem:[%s526 + $0x10] sm:$0xff]
        %v572 = vld [vmem:[%s526 + $0x18] sm:$0xff]
        %v573 = vld [vmem:[%s526 + $0x20] sm:$0xff]
        %v574 = vld [vmem:[%s526 + $0x28] sm:$0xff]
        %v575 = vld [vmem:[%s529] sm:$0x1]
        %v577 = vperm.slane %v575, 0
        %vm579 = vcmask 392192
        %v581 = vsel %vm579, %v568, 0
        %583 = vmatpush.msra.mxu0 0.0
        %584 = vmatpush.msra.mxu0 0.0
        %585 = vmatpush.msra.mxu0 0.0
        %586 = vmatpush.msra.mxu0 0.0
        %587 = vmatpush.msra.mxu0 0.0
        %588 = vmatpush.msra.mxu0 0.0
        %589 = vmatpush.msra.mxu0 0.0
        %590 = vmatpush.msra.mxu0 0.0
        %591 = vmatpush.msra.mxu0 0.0
        %592 = vmatpush.msra.mxu0 0.0
        %593 = vmatpush.msra.mxu0 %v574
        %594 = vmatpush.msra.mxu0 %v573
        %595 = vmatpush.msra.mxu0 %v572
        %596 = vmatpush.msra.mxu0 %v571
        %597 = vmatpush.msra.mxu0 %v570
        %598 = vmatpush.msra.mxu0 %v569
        %599 = vmatmul.f32.gmra.mxu0 %v581
        %v600 = vpop.f32.mrf.mxu0
        %v601 = vadd.f32 %v577, %v600
        %602 = vdwg.mxu0
        %vm603 = vcmp.ge.f32.partialorder %v601, 0.0
        %v604 = vmul.f32 %v601, 0.01
        %v605 = vsel %vm603, %v601, %v604
        %v606 = vld [vmem:[%s534] sm:$0xff]
        %v607 = vld [vmem:[%s534 + $0x8] sm:$0xff]
        %v608 = vld [vmem:[%s534 + $0x10] sm:$0xff]
        %v609 = vld [vmem:[%s534 + $0x18] sm:$0xff]
        %v610 = vld [vmem:[%s534 + $0x20] sm:$0xff]
        %v611 = vld [vmem:[%s534 + $0x28] sm:$0xff]
        %v612 = vld [vmem:[%s537] sm:$0x1]
        %v614 = vperm.slane %v612, 0
        %616 = vmatpush.msra.mxu0 0.0
        %617 = vmatpush.msra.mxu0 0.0
        %618 = vmatpush.msra.mxu0 0.0
        %619 = vmatpush.msra.mxu0 0.0
        %620 = vmatpush.msra.mxu0 0.0
        %621 = vmatpush.msra.mxu0 0.0
        %622 = vmatpush.msra.mxu0 0.0
        %623 = vmatpush.msra.mxu0 0.0
        %624 = vmatpush.msra.mxu0 0.0
        %625 = vmatpush.msra.mxu0 0.0
        %626 = vmatpush.msra.mxu0 %v611
        %627 = vmatpush.msra.mxu0 %v610
        %628 = vmatpush.msra.mxu0 %v609
        %629 = vmatpush.msra.mxu0 %v608
        %630 = vmatpush.msra.mxu0 %v607
        %631 = vmatpush.msra.mxu0 %v606
        %632 = vmatmul.f32.gmra.mxu0 %v581
        %v633 = vpop.f32.mrf.mxu0
        %v634 = vadd.f32 %v614, %v633
        %635 = vdwg.mxu0
        %vm636 = vcmp.ge.f32.partialorder %v634, 0.0
        %v637 = vmul.f32 %v634, 0.01
        %v638 = vsel %vm636, %v634, %v637
        %v639 = vld [vmem:[%s542] sm:$0xff]
        %v640 = vld [vmem:[%s542 + $0x8] sm:$0xff]
        %v641 = vld [vmem:[%s542 + $0x10] sm:$0xff]
        %v642 = vld [vmem:[%s542 + $0x18] sm:$0xff]
        %v643 = vld [vmem:[%s542 + $0x20] sm:$0xff]
        %v644 = vld [vmem:[%s542 + $0x28] sm:$0xff]
        %v645 = vld [vmem:[%s542 + $0x30] sm:$0xff]
        %v646 = vld [vmem:[%s542 + $0x38] sm:$0xff]
        %v647 = vld [vmem:[%s542 + $0x40] sm:$0xff]
        %v648 = vld [vmem:[%s542 + $0x48] sm:$0xff]
        %v649 = vld [vmem:[%s542 + $0x50] sm:$0xff]
        %v650 = vld [vmem:[%s542 + $0x58] sm:$0xff]
        %v651 = vld [vmem:[%s546] sm:$0x3]
        %v653 = vperm.slane %v651, 0
        %v654 = vperm.slane %v651, 1
        %657 = vmatpush.msra.mxu0 0.0
        %658 = vmatpush.msra.mxu0 0.0
        %659 = vmatpush.msra.mxu0 0.0
        %660 = vmatpush.msra.mxu0 0.0
        %661 = vmatpush.msra.mxu0 0.0
        %662 = vmatpush.msra.mxu0 0.0
        %663 = vmatpush.msra.mxu0 0.0
        %664 = vmatpush.msra.mxu0 0.0
        %665 = vmatpush.msra.mxu0 0.0
        %666 = vmatpush.msra.mxu0 0.0
        %667 = vmatpush.msra.mxu0 %v649
        %668 = vmatpush.msra.mxu0 %v647
        %669 = vmatpush.msra.mxu0 %v645
        %670 = vmatpush.msra.mxu0 %v643
        %671 = vmatpush.msra.mxu0 %v641
        %672 = vmatpush.msra.mxu0 %v639
        %673 = vmatmul.f32.gmra.mxu0 %v581
        %v674 = vpop.f32.mrf.mxu0
        %v675 = vadd.f32 %v653, %v674
        %676 = vdwg.mxu0
        %677 = vmatpush.msra.mxu0 0.0
        %678 = vmatpush.msra.mxu0 0.0
        %679 = vmatpush.msra.mxu0 0.0
        %680 = vmatpush.msra.mxu0 0.0
        %681 = vmatpush.msra.mxu0 0.0
        %682 = vmatpush.msra.mxu0 0.0
        %683 = vmatpush.msra.mxu0 0.0
        %684 = vmatpush.msra.mxu0 0.0
        %685 = vmatpush.msra.mxu0 0.0
        %686 = vmatpush.msra.mxu0 0.0
        %687 = vmatpush.msra.mxu0 %v650
        %688 = vmatpush.msra.mxu0 %v648
        %689 = vmatpush.msra.mxu0 %v646
        %690 = vmatpush.msra.mxu0 %v644
        %691 = vmatpush.msra.mxu0 %v642
        %692 = vmatpush.msra.mxu0 %v640
        %693 = vmatmul.f32.gmra.mxu0 %v581
        %v694 = vpop.f32.mrf.mxu0
        %v695 = vadd.f32 %v654, %v694
        %696 = vdwg.mxu0
        %vm697 = vcmp.ge.f32.partialorder %v675, 0.0
        %vm698 = vcmp.ge.f32.partialorder %v695, 0.0
        %v699 = vmul.f32 %v675, 0.01
        %v700 = vmul.f32 %v695, 0.01
        %v701 = vsel %vm697, %v675, %v699
        %v702 = vsel %vm698, %v695, %v700
        %704 = vrot.lane.b32.xlu0 %v605, 120
        %v705 = vpop.permute.xlu0 %704
        %707 = vrot.lane.b32.xlu0 %v605, 112
        %v708 = vpop.permute.xlu0 %707
        %710 = vrot.lane.b32.xlu0 %v605, 104
        %v711 = vpop.permute.xlu0 %710
        %713 = vrot.lane.b32.xlu0 %v605, 96
        %v714 = vpop.permute.xlu0 %713
        %716 = vrot.lane.b32.xlu0 %v605, 88
        %v717 = vpop.permute.xlu0 %716
        %v719 = vrot.slane %v708, 4
        %vm720 = vcmask 1047556
        %v721 = vsel %vm720, %v719, %v605
        %v722 = vrot.slane %v605, 4
        %v723 = vsel %vm720, %v708, %v722
        %v725 = vunpack.c.l.s4 1983009808
        %v726 = vunpack.c.0.s8 %v725
        %v727 = vperm.slane %v721, %v726
        %v729 = vunpack.c.l.s4 1983009808
        %v730 = vunpack.c.0.s8 %v729
        %v731 = vperm.slane %v723, %v730
        %v732 = vrot.slane %v711, 4
        %v733 = vsel %vm720, %v732, %v705
        %v734 = vrot.slane %v705, 4
        %v735 = vsel %vm720, %v711, %v734
        %v737 = vunpack.c.l.s4 1983009808
        %v738 = vunpack.c.0.s8 %v737
        %v739 = vperm.slane %v733, %v738
        %v741 = vunpack.c.l.s4 1983009808
        %v742 = vunpack.c.0.s8 %v741
        %v743 = vperm.slane %v735, %v742
        %v744 = vrot.slane %v714, 4
        %v745 = vsel %vm720, 0.0, %v744
        %v747 = vunpack.c.l.s4 1983009808
        %v748 = vunpack.c.0.s8 %v747
        %v749 = vperm.slane %v714, %v748
        %v751 = vunpack.c.l.s4 1983009808
        %v752 = vunpack.c.0.s8 %v751
        %v753 = vperm.slane %v745, %v752
        %v754 = vrot.slane %v717, 4
        %v755 = vsel %vm720, 0.0, %v754
        %v757 = vunpack.c.l.s4 1983009808
        %v758 = vunpack.c.0.s8 %v757
        %v759 = vperm.slane %v717, %v758
        %v761 = vunpack.c.l.s4 1983009808
        %v762 = vunpack.c.0.s8 %v761
        %v763 = vperm.slane %v755, %v762
        %v764 = vrot.slane %v739, 4
        %v765 = vsel %vm720, %v764, %v727
        %v766 = vrot.slane %v727, 4
        %v767 = vsel %vm720, %v739, %v766
        %v769 = vunpack.c.l.s4 1934713408
        %v770 = vunpack.c.0.s8 %v769
        %v771 = vperm.slane %v765, %v770
        %v773 = vunpack.c.l.s4 1934713408
        %v774 = vunpack.c.0.s8 %v773
        %v775 = vperm.slane %v767, %v774
        %v776 = vrot.slane %v743, 4
        %v777 = vsel %vm720, %v776, %v731
        %v778 = vrot.slane %v731, 4
        %v779 = vsel %vm720, %v743, %v778
        %v781 = vunpack.c.l.s4 1934713408
        %v782 = vunpack.c.0.s8 %v781
        %v783 = vperm.slane %v777, %v782
        %v785 = vunpack.c.l.s4 1934713408
        %v786 = vunpack.c.0.s8 %v785
        %v787 = vperm.slane %v779, %v786
        %v788 = vrot.slane %v759, 4
        %v789 = vsel %vm720, %v788, %v749
        %v790 = vrot.slane %v749, 4
        %v791 = vsel %vm720, %v759, %v790
        %v793 = vunpack.c.l.s4 1934713408
        %v794 = vunpack.c.0.s8 %v793
        %v795 = vperm.slane %v789, %v794
        %v797 = vunpack.c.l.s4 1934713408
        %v798 = vunpack.c.0.s8 %v797
        %v799 = vperm.slane %v791, %v798
        %v800 = vrot.slane %v763, 4
        %v801 = vsel %vm720, %v800, %v753
        %v802 = vrot.slane %v753, 4
        %v803 = vsel %vm720, %v763, %v802
        %v805 = vunpack.c.l.s4 1934713408
        %v806 = vunpack.c.0.s8 %v805
        %v807 = vperm.slane %v801, %v806
        %v809 = vunpack.c.l.s4 1934713408
        %v810 = vunpack.c.0.s8 %v809
        %v811 = vperm.slane %v803, %v810
        %v812 = vrot.slane %v795, 4
        %v813 = vsel %vm720, %v812, %v771
        %v814 = vrot.slane %v771, 4
        %v815 = vsel %vm720, %v795, %v814
        %v816 = vrot.slane %v799, 4
        %v817 = vsel %vm720, %v816, %v775
        %v818 = vrot.slane %v775, 4
        %v819 = vsel %vm720, %v799, %v818
        %v820 = vrot.slane %v807, 4
        %v821 = vsel %vm720, %v820, %v783
        %v822 = vrot.slane %v783, 4
        %v823 = vsel %vm720, %v807, %v822
        %v824 = vrot.slane %v811, 4
        %v825 = vsel %vm720, %v824, %v787
        %v826 = vrot.slane %v787, 4
        %v827 = vsel %vm720, %v811, %v826
        %v828 = vrot.slane %v817, 4
        %v829 = vsel %vm720, %v828, %v813
        %v830 = vrot.slane %v813, 4
        %v831 = vsel %vm720, %v817, %v830
        %v833 = vunpack.c.l.s4 1983009808
        %v834 = vunpack.c.0.s8 %v833
        %v835 = vperm.slane %v829, %v834
        %v837 = vunpack.c.l.s4 1983009808
        %v838 = vunpack.c.0.s8 %v837
        %v839 = vperm.slane %v831, %v838
        %v840 = vrot.slane %v819, 4
        %v841 = vsel %vm720, %v840, %v815
        %v842 = vrot.slane %v815, 4
        %v843 = vsel %vm720, %v819, %v842
        %v845 = vunpack.c.l.s4 1983009808
        %v846 = vunpack.c.0.s8 %v845
        %v847 = vperm.slane %v841, %v846
        %v849 = vunpack.c.l.s4 1983009808
        %v850 = vunpack.c.0.s8 %v849
        %v851 = vperm.slane %v843, %v850
        %v852 = vrot.slane %v825, 4
        %v853 = vsel %vm720, %v852, %v821
        %v854 = vrot.slane %v821, 4
        %v855 = vsel %vm720, %v825, %v854
        %v857 = vunpack.c.l.s4 1983009808
        %v858 = vunpack.c.0.s8 %v857
        %v859 = vperm.slane %v853, %v858
        %v861 = vunpack.c.l.s4 1983009808
        %v862 = vunpack.c.0.s8 %v861
        %v863 = vperm.slane %v855, %v862
        %v864 = vrot.slane %v827, 4
        %v865 = vsel %vm720, %v864, %v823
        %v866 = vrot.slane %v823, 4
        %v867 = vsel %vm720, %v827, %v866
        %v869 = vunpack.c.l.s4 1983009808
        %v870 = vunpack.c.0.s8 %v869
        %v871 = vperm.slane %v865, %v870
        %v873 = vunpack.c.l.s4 1983009808
        %v874 = vunpack.c.0.s8 %v873
        %v875 = vperm.slane %v867, %v874
        %v876 = vrot.slane %v847, 4
        %v877 = vsel %vm720, %v876, %v835
        %v878 = vrot.slane %v835, 4
        %v879 = vsel %vm720, %v847, %v878
        %v881 = vunpack.c.l.s4 1934713408
        %v882 = vunpack.c.0.s8 %v881
        %v883 = vperm.slane %v877, %v882
        %v885 = vunpack.c.l.s4 1934713408
        %v886 = vunpack.c.0.s8 %v885
        %v887 = vperm.slane %v879, %v886
        %v888 = vrot.slane %v851, 4
        %v889 = vsel %vm720, %v888, %v839
        %v891 = vunpack.c.l.s4 1934713408
        %v892 = vunpack.c.0.s8 %v891
        %v893 = vperm.slane %v889, %v892
        %v894 = vrot.slane %v871, 4
        %v895 = vsel %vm720, %v894, %v859
        %v896 = vrot.slane %v859, 4
        %v897 = vsel %vm720, %v871, %v896
        %v899 = vunpack.c.l.s4 1934713408
        %v900 = vunpack.c.0.s8 %v899
        %v901 = vperm.slane %v895, %v900
        %v903 = vunpack.c.l.s4 1934713408
        %v904 = vunpack.c.0.s8 %v903
        %v905 = vperm.slane %v897, %v904
        %v906 = vrot.slane %v875, 4
        %v907 = vsel %vm720, %v906, %v863
        %v909 = vunpack.c.l.s4 1934713408
        %v910 = vunpack.c.0.s8 %v909
        %v911 = vperm.slane %v907, %v910
        %v912 = vrot.slane %v901, 4
        %v913 = vsel %vm720, %v912, %v883
        %v914 = vrot.slane %v883, 4
        %v915 = vsel %vm720, %v901, %v914
        %v916 = vrot.slane %v905, 4
        %v917 = vsel %vm720, %v916, %v887
        %v918 = vrot.slane %v887, 4
        %v919 = vsel %vm720, %v905, %v918
        %v920 = vrot.slane %v911, 4
        %v921 = vsel %vm720, %v920, %v893
        %v922 = vrot.slane %v893, 4
        %v923 = vsel %vm720, %v911, %v922
        %925 = vrot.lane.b32.xlu0 %v638, 120
        %v926 = vpop.permute.xlu0 %925
        %928 = vrot.lane.b32.xlu0 %v638, 112
        %v929 = vpop.permute.xlu0 %928
        %931 = vrot.lane.b32.xlu0 %v638, 104
        %v932 = vpop.permute.xlu0 %931
        %934 = vrot.lane.b32.xlu0 %v638, 96
        %v935 = vpop.permute.xlu0 %934
        %937 = vrot.lane.b32.xlu0 %v638, 88
        %v938 = vpop.permute.xlu0 %937
        %v940 = vrot.slane %v929, 4
        %v941 = vsel %vm720, %v940, %v638
        %v942 = vrot.slane %v638, 4
        %v943 = vsel %vm720, %v929, %v942
        %v945 = vunpack.c.l.s4 1983009808
        %v946 = vunpack.c.0.s8 %v945
        %v947 = vperm.slane %v941, %v946
        %v949 = vunpack.c.l.s4 1983009808
        %v950 = vunpack.c.0.s8 %v949
        %v951 = vperm.slane %v943, %v950
        %v952 = vrot.slane %v932, 4
        %v953 = vsel %vm720, %v952, %v926
        %v954 = vrot.slane %v926, 4
        %v955 = vsel %vm720, %v932, %v954
        %v957 = vunpack.c.l.s4 1983009808
        %v958 = vunpack.c.0.s8 %v957
        %v959 = vperm.slane %v953, %v958
        %v961 = vunpack.c.l.s4 1983009808
        %v962 = vunpack.c.0.s8 %v961
        %v963 = vperm.slane %v955, %v962
        %v964 = vrot.slane %v935, 4
        %v965 = vsel %vm720, 0.0, %v964
        %v967 = vunpack.c.l.s4 1983009808
        %v968 = vunpack.c.0.s8 %v967
        %v969 = vperm.slane %v935, %v968
        %v971 = vunpack.c.l.s4 1983009808
        %v972 = vunpack.c.0.s8 %v971
        %v973 = vperm.slane %v965, %v972
        %v974 = vrot.slane %v938, 4
        %v975 = vsel %vm720, 0.0, %v974
        %v977 = vunpack.c.l.s4 1983009808
        %v978 = vunpack.c.0.s8 %v977
        %v979 = vperm.slane %v938, %v978
        %v981 = vunpack.c.l.s4 1983009808
        %v982 = vunpack.c.0.s8 %v981
        %v983 = vperm.slane %v975, %v982
        %v984 = vrot.slane %v959, 4
        %v985 = vsel %vm720, %v984, %v947
        %v986 = vrot.slane %v947, 4
        %v987 = vsel %vm720, %v959, %v986
        %v989 = vunpack.c.l.s4 1934713408
        %v990 = vunpack.c.0.s8 %v989
        %v991 = vperm.slane %v985, %v990
        %v993 = vunpack.c.l.s4 1934713408
        %v994 = vunpack.c.0.s8 %v993
        %v995 = vperm.slane %v987, %v994
        %v996 = vrot.slane %v963, 4
        %v997 = vsel %vm720, %v996, %v951
        %v998 = vrot.slane %v951, 4
        %v999 = vsel %vm720, %v963, %v998
        %v1001 = vunpack.c.l.s4 1934713408
        %v1002 = vunpack.c.0.s8 %v1001
        %v1003 = vperm.slane %v997, %v1002
        %v1005 = vunpack.c.l.s4 1934713408
        %v1006 = vunpack.c.0.s8 %v1005
        %v1007 = vperm.slane %v999, %v1006
        %v1008 = vrot.slane %v979, 4
        %v1009 = vsel %vm720, %v1008, %v969
        %v1010 = vrot.slane %v969, 4
        %v1011 = vsel %vm720, %v979, %v1010
        %v1013 = vunpack.c.l.s4 1934713408
        %v1014 = vunpack.c.0.s8 %v1013
        %v1015 = vperm.slane %v1009, %v1014
        %v1017 = vunpack.c.l.s4 1934713408
        %v1018 = vunpack.c.0.s8 %v1017
        %v1019 = vperm.slane %v1011, %v1018
        %v1020 = vrot.slane %v983, 4
        %v1021 = vsel %vm720, %v1020, %v973
        %v1022 = vrot.slane %v973, 4
        %v1023 = vsel %vm720, %v983, %v1022
        %v1025 = vunpack.c.l.s4 1934713408
        %v1026 = vunpack.c.0.s8 %v1025
        %v1027 = vperm.slane %v1021, %v1026
        %v1029 = vunpack.c.l.s4 1934713408
        %v1030 = vunpack.c.0.s8 %v1029
        %v1031 = vperm.slane %v1023, %v1030
        %v1032 = vrot.slane %v1015, 4
        %v1033 = vsel %vm720, %v1032, %v991
        %v1034 = vrot.slane %v991, 4
        %v1035 = vsel %vm720, %v1015, %v1034
        %v1036 = vrot.slane %v1019, 4
        %v1037 = vsel %vm720, %v1036, %v995
        %v1038 = vrot.slane %v995, 4
        %v1039 = vsel %vm720, %v1019, %v1038
        %v1040 = vrot.slane %v1027, 4
        %v1041 = vsel %vm720, %v1040, %v1003
        %v1042 = vrot.slane %v1003, 4
        %v1043 = vsel %vm720, %v1027, %v1042
        %v1044 = vrot.slane %v1031, 4
        %v1045 = vsel %vm720, %v1044, %v1007
        %v1046 = vrot.slane %v1007, 4
        %v1047 = vsel %vm720, %v1031, %v1046
        %v1048 = vrot.slane %v1037, 4
        %v1049 = vsel %vm720, %v1048, %v1033
        %v1050 = vrot.slane %v1033, 4
        %v1051 = vsel %vm720, %v1037, %v1050
        %v1053 = vunpack.c.l.s4 1983009808
        %v1054 = vunpack.c.0.s8 %v1053
        %v1055 = vperm.slane %v1049, %v1054
        %v1057 = vunpack.c.l.s4 1983009808
        %v1058 = vunpack.c.0.s8 %v1057
        %v1059 = vperm.slane %v1051, %v1058
        %v1060 = vrot.slane %v1039, 4
        %v1061 = vsel %vm720, %v1060, %v1035
        %v1062 = vrot.slane %v1035, 4
        %v1063 = vsel %vm720, %v1039, %v1062
        %v1065 = vunpack.c.l.s4 1983009808
        %v1066 = vunpack.c.0.s8 %v1065
        %v1067 = vperm.slane %v1061, %v1066
        %v1069 = vunpack.c.l.s4 1983009808
        %v1070 = vunpack.c.0.s8 %v1069
        %v1071 = vperm.slane %v1063, %v1070
        %v1072 = vrot.slane %v1045, 4
        %v1073 = vsel %vm720, %v1072, %v1041
        %v1074 = vrot.slane %v1041, 4
        %v1075 = vsel %vm720, %v1045, %v1074
        %v1077 = vunpack.c.l.s4 1983009808
        %v1078 = vunpack.c.0.s8 %v1077
        %v1079 = vperm.slane %v1073, %v1078
        %v1081 = vunpack.c.l.s4 1983009808
        %v1082 = vunpack.c.0.s8 %v1081
        %v1083 = vperm.slane %v1075, %v1082
        %v1084 = vrot.slane %v1047, 4
        %v1085 = vsel %vm720, %v1084, %v1043
        %v1086 = vrot.slane %v1043, 4
        %v1087 = vsel %vm720, %v1047, %v1086
        %v1089 = vunpack.c.l.s4 1983009808
        %v1090 = vunpack.c.0.s8 %v1089
        %v1091 = vperm.slane %v1085, %v1090
        %v1093 = vunpack.c.l.s4 1983009808
        %v1094 = vunpack.c.0.s8 %v1093
        %v1095 = vperm.slane %v1087, %v1094
        %v1096 = vrot.slane %v1067, 4
        %v1097 = vsel %vm720, %v1096, %v1055
        %v1098 = vrot.slane %v1055, 4
        %v1099 = vsel %vm720, %v1067, %v1098
        %v1101 = vunpack.c.l.s4 1934713408
        %v1102 = vunpack.c.0.s8 %v1101
        %v1103 = vperm.slane %v1097, %v1102
        %v1105 = vunpack.c.l.s4 1934713408
        %v1106 = vunpack.c.0.s8 %v1105
        %v1107 = vperm.slane %v1099, %v1106
        %v1108 = vrot.slane %v1071, 4
        %v1109 = vsel %vm720, %v1108, %v1059
        %v1111 = vunpack.c.l.s4 1934713408
        %v1112 = vunpack.c.0.s8 %v1111
        %v1113 = vperm.slane %v1109, %v1112
        %v1114 = vrot.slane %v1091, 4
        %v1115 = vsel %vm720, %v1114, %v1079
        %v1116 = vrot.slane %v1079, 4
        %v1117 = vsel %vm720, %v1091, %v1116
        %v1119 = vunpack.c.l.s4 1934713408
        %v1120 = vunpack.c.0.s8 %v1119
        %v1121 = vperm.slane %v1115, %v1120
        %v1123 = vunpack.c.l.s4 1934713408
        %v1124 = vunpack.c.0.s8 %v1123
        %v1125 = vperm.slane %v1117, %v1124
        %v1126 = vrot.slane %v1095, 4
        %v1127 = vsel %vm720, %v1126, %v1083
        %v1129 = vunpack.c.l.s4 1934713408
        %v1130 = vunpack.c.0.s8 %v1129
        %v1131 = vperm.slane %v1127, %v1130
        %v1132 = vrot.slane %v1121, 4
        %v1133 = vsel %vm720, %v1132, %v1103
        %v1134 = vrot.slane %v1103, 4
        %v1135 = vsel %vm720, %v1121, %v1134
        %v1136 = vrot.slane %v1125, 4
        %v1137 = vsel %vm720, %v1136, %v1107
        %v1138 = vrot.slane %v1107, 4
        %v1139 = vsel %vm720, %v1125, %v1138
        %v1140 = vrot.slane %v1131, 4
        %v1141 = vsel %vm720, %v1140, %v1113
        %v1142 = vrot.slane %v1113, 4
        %v1143 = vsel %vm720, %v1131, %v1142
        %1145 = vrot.lane.b32.xlu0 %v701, 104
        %v1146 = vpop.permute.xlu0 %1145
        %1148 = vrot.lane.b32.xlu0 %v701, 80
        %v1149 = vpop.permute.xlu0 %1148
        %1151 = vrot.lane.b32.xlu0 %v701, 56
        %v1152 = vpop.permute.xlu0 %1151
        %1154 = vrot.lane.b32.xlu0 %v701, 32
        %v1155 = vpop.permute.xlu0 %1154
        %1158 = vrot.lane.b32.xlu0 %v701, 8
        %v1159 = vpop.permute.xlu0 %1158
        %1160 = vrot.lane.b32.xlu0 %v702, 8
        %v1161 = vpop.permute.xlu0 %1160
        %vm1162 = vcmask 64512
        %v1163 = vsel %vm1162, %v1159, %v1161
        %v1165 = vrot.slane %v1149, 4
        %v1166 = vsel %vm720, %v1165, %v701
        %v1167 = vrot.slane %v701, 4
        %v1168 = vsel %vm720, %v1149, %v1167
        %v1170 = vunpack.c.l.s4 1983009808
        %v1171 = vunpack.c.0.s8 %v1170
        %v1172 = vperm.slane %v1166, %v1171
        %v1174 = vunpack.c.l.s4 1983009808
        %v1175 = vunpack.c.0.s8 %v1174
        %v1176 = vperm.slane %v1168, %v1175
        %v1177 = vrot.slane %v1152, 4
        %v1178 = vsel %vm720, %v1177, %v1146
        %v1179 = vrot.slane %v1146, 4
        %v1180 = vsel %vm720, %v1152, %v1179
        %v1182 = vunpack.c.l.s4 1983009808
        %v1183 = vunpack.c.0.s8 %v1182
        %v1184 = vperm.slane %v1178, %v1183
        %v1186 = vunpack.c.l.s4 1983009808
        %v1187 = vunpack.c.0.s8 %v1186
        %v1188 = vperm.slane %v1180, %v1187
        %v1189 = vrot.slane %v1155, 4
        %v1190 = vsel %vm720, 0.0, %v1189
        %v1192 = vunpack.c.l.s4 1983009808
        %v1193 = vunpack.c.0.s8 %v1192
        %v1194 = vperm.slane %v1155, %v1193
        %v1196 = vunpack.c.l.s4 1983009808
        %v1197 = vunpack.c.0.s8 %v1196
        %v1198 = vperm.slane %v1190, %v1197
        %v1199 = vrot.slane %v1163, 4
        %v1200 = vsel %vm720, 0.0, %v1199
        %v1202 = vunpack.c.l.s4 1983009808
        %v1203 = vunpack.c.0.s8 %v1202
        %v1204 = vperm.slane %v1163, %v1203
        %v1206 = vunpack.c.l.s4 1983009808
        %v1207 = vunpack.c.0.s8 %v1206
        %v1208 = vperm.slane %v1200, %v1207
        %v1209 = vrot.slane %v1184, 4
        %v1210 = vsel %vm720, %v1209, %v1172
        %v1211 = vrot.slane %v1172, 4
        %v1212 = vsel %vm720, %v1184, %v1211
        %v1214 = vunpack.c.l.s4 1934713408
        %v1215 = vunpack.c.0.s8 %v1214
        %v1216 = vperm.slane %v1210, %v1215
        %v1218 = vunpack.c.l.s4 1934713408
        %v1219 = vunpack.c.0.s8 %v1218
        %v1220 = vperm.slane %v1212, %v1219
        %v1221 = vrot.slane %v1188, 4
        %v1222 = vsel %vm720, %v1221, %v1176
        %v1223 = vrot.slane %v1176, 4
        %v1224 = vsel %vm720, %v1188, %v1223
        %v1226 = vunpack.c.l.s4 1934713408
        %v1227 = vunpack.c.0.s8 %v1226
        %v1228 = vperm.slane %v1222, %v1227
        %v1230 = vunpack.c.l.s4 1934713408
        %v1231 = vunpack.c.0.s8 %v1230
        %v1232 = vperm.slane %v1224, %v1231
        %v1233 = vrot.slane %v1204, 4
        %v1234 = vsel %vm720, %v1233, %v1194
        %v1235 = vrot.slane %v1194, 4
        %v1236 = vsel %vm720, %v1204, %v1235
        %v1238 = vunpack.c.l.s4 1934713408
        %v1239 = vunpack.c.0.s8 %v1238
        %v1240 = vperm.slane %v1234, %v1239
        %v1242 = vunpack.c.l.s4 1934713408
        %v1243 = vunpack.c.0.s8 %v1242
        %v1244 = vperm.slane %v1236, %v1243
        %v1245 = vrot.slane %v1208, 4
        %v1246 = vsel %vm720, %v1245, %v1198
        %v1247 = vrot.slane %v1198, 4
        %v1248 = vsel %vm720, %v1208, %v1247
        %v1250 = vunpack.c.l.s4 1934713408
        %v1251 = vunpack.c.0.s8 %v1250
        %v1252 = vperm.slane %v1246, %v1251
        %v1254 = vunpack.c.l.s4 1934713408
        %v1255 = vunpack.c.0.s8 %v1254
        %v1256 = vperm.slane %v1248, %v1255
        %v1257 = vrot.slane %v1240, 4
        %v1258 = vsel %vm720, %v1257, %v1216
        %v1259 = vrot.slane %v1216, 4
        %v1260 = vsel %vm720, %v1240, %v1259
        %v1261 = vrot.slane %v1244, 4
        %v1262 = vsel %vm720, %v1261, %v1220
        %v1263 = vrot.slane %v1220, 4
        %v1264 = vsel %vm720, %v1244, %v1263
        %v1265 = vrot.slane %v1252, 4
        %v1266 = vsel %vm720, %v1265, %v1228
        %v1267 = vrot.slane %v1228, 4
        %v1268 = vsel %vm720, %v1252, %v1267
        %v1269 = vrot.slane %v1256, 4
        %v1270 = vsel %vm720, %v1269, %v1232
        %v1271 = vrot.slane %v1232, 4
        %v1272 = vsel %vm720, %v1256, %v1271
        %v1273 = vrot.slane %v1262, 4
        %v1274 = vsel %vm720, %v1273, %v1258
        %v1275 = vrot.slane %v1258, 4
        %v1276 = vsel %vm720, %v1262, %v1275
        %v1278 = vunpack.c.l.s4 1983009808
        %v1279 = vunpack.c.0.s8 %v1278
        %v1280 = vperm.slane %v1274, %v1279
        %v1282 = vunpack.c.l.s4 1983009808
        %v1283 = vunpack.c.0.s8 %v1282
        %v1284 = vperm.slane %v1276, %v1283
        %v1285 = vrot.slane %v1264, 4
        %v1286 = vsel %vm720, %v1285, %v1260
        %v1287 = vrot.slane %v1260, 4
        %v1288 = vsel %vm720, %v1264, %v1287
        %v1290 = vunpack.c.l.s4 1983009808
        %v1291 = vunpack.c.0.s8 %v1290
        %v1292 = vperm.slane %v1286, %v1291
        %v1294 = vunpack.c.l.s4 1983009808
        %v1295 = vunpack.c.0.s8 %v1294
        %v1296 = vperm.slane %v1288, %v1295
        %v1297 = vrot.slane %v1270, 4
        %v1298 = vsel %vm720, %v1297, %v1266
        %v1299 = vrot.slane %v1266, 4
        %v1300 = vsel %vm720, %v1270, %v1299
        %v1302 = vunpack.c.l.s4 1983009808
        %v1303 = vunpack.c.0.s8 %v1302
        %v1304 = vperm.slane %v1298, %v1303
        %v1306 = vunpack.c.l.s4 1983009808
        %v1307 = vunpack.c.0.s8 %v1306
        %v1308 = vperm.slane %v1300, %v1307
        %v1309 = vrot.slane %v1272, 4
        %v1310 = vsel %vm720, %v1309, %v1268
        %v1311 = vrot.slane %v1268, 4
        %v1312 = vsel %vm720, %v1272, %v1311
        %v1314 = vunpack.c.l.s4 1983009808
        %v1315 = vunpack.c.0.s8 %v1314
        %v1316 = vperm.slane %v1310, %v1315
        %v1318 = vunpack.c.l.s4 1983009808
        %v1319 = vunpack.c.0.s8 %v1318
        %v1320 = vperm.slane %v1312, %v1319
        %v1321 = vrot.slane %v1292, 4
        %v1322 = vsel %vm720, %v1321, %v1280
        %v1323 = vrot.slane %v1280, 4
        %v1324 = vsel %vm720, %v1292, %v1323
        %v1326 = vunpack.c.l.s4 1934713408
        %v1327 = vunpack.c.0.s8 %v1326
        %v1328 = vperm.slane %v1322, %v1327
        %v1330 = vunpack.c.l.s4 1934713408
        %v1331 = vunpack.c.0.s8 %v1330
        %v1332 = vperm.slane %v1324, %v1331
        %v1333 = vrot.slane %v1296, 4
        %v1334 = vsel %vm720, %v1333, %v1284
        %v1336 = vunpack.c.l.s4 1934713408
        %v1337 = vunpack.c.0.s8 %v1336
        %v1338 = vperm.slane %v1334, %v1337
        %v1339 = vrot.slane %v1316, 4
        %v1340 = vsel %vm720, %v1339, %v1304
        %v1341 = vrot.slane %v1304, 4
        %v1342 = vsel %vm720, %v1316, %v1341
        %v1344 = vunpack.c.l.s4 1934713408
        %v1345 = vunpack.c.0.s8 %v1344
        %v1346 = vperm.slane %v1340, %v1345
        %v1348 = vunpack.c.l.s4 1934713408
        %v1349 = vunpack.c.0.s8 %v1348
        %v1350 = vperm.slane %v1342, %v1349
        %v1351 = vrot.slane %v1320, 4
        %v1352 = vsel %vm720, %v1351, %v1308
        %v1354 = vunpack.c.l.s4 1934713408
        %v1355 = vunpack.c.0.s8 %v1354
        %v1356 = vperm.slane %v1352, %v1355
        %v1357 = vrot.slane %v1346, 4
        %v1358 = vsel %vm720, %v1357, %v1328
        %v1359 = vrot.slane %v1328, 4
        %v1360 = vsel %vm720, %v1346, %v1359
        %v1361 = vrot.slane %v1350, 4
        %v1362 = vsel %vm720, %v1361, %v1332
        %v1363 = vrot.slane %v1332, 4
        %v1364 = vsel %vm720, %v1350, %v1363
        %v1365 = vrot.slane %v1356, 4
        %v1366 = vsel %vm720, %v1365, %v1338
        %v1367 = vrot.slane %v1338, 4
        %v1368 = vsel %vm720, %v1356, %v1367
        %v1370 = vsel %vm1162, %v913, 0
        %v1373 = vsel %vm1162, %v1133, 0
        %1375 = vmatpush.xpose.msra.mxu0 0.0
        %1376 = vmatpush.xpose.msra.mxu0 0.0
        %1377 = vmatpush.xpose.msra.mxu0 0.0
        %1378 = vmatpush.xpose.msra.mxu0 0.0
        %1379 = vmatpush.xpose.msra.mxu0 0.0
        %1380 = vmatpush.xpose.msra.mxu0 0.0
        %1381 = vmatpush.xpose.msra.mxu0 0.0
        %1382 = vmatpush.xpose.msra.mxu0 0.0
        %1383 = vmatpush.xpose.msra.mxu0 0.0
        %1384 = vmatpush.xpose.msra.mxu0 0.0
        %1385 = vmatpush.xpose.msra.mxu0 0.0
        %1386 = vmatpush.xpose.msra.mxu0 0.0
        %1387 = vmatpush.xpose.msra.mxu0 0.0
        %1388 = vmatpush.xpose.msra.mxu0 0.0
        %1389 = vmatpush.xpose.msra.mxu0 0.0
        %1390 = vmatpush.xpose.msra.mxu0 %v1373
        %1391 = vmatmul.f32.gmra.mxu0 %v1370
        %v1392 = vpop.f32.mrf.mxu0
        %v1393 = vadd.f32 0.0, %v1392
        %1394 = vdwg.mxu0
        %v1396 = vsel %vm1162, %v915, 0
        %v1399 = vsel %vm1162, %v1135, 0
        %1401 = vmatpush.xpose.msra.mxu0 0.0
        %1402 = vmatpush.xpose.msra.mxu0 0.0
        %1403 = vmatpush.xpose.msra.mxu0 0.0
        %1404 = vmatpush.xpose.msra.mxu0 0.0
        %1405 = vmatpush.xpose.msra.mxu0 0.0
        %1406 = vmatpush.xpose.msra.mxu0 0.0
        %1407 = vmatpush.xpose.msra.mxu0 0.0
        %1408 = vmatpush.xpose.msra.mxu0 0.0
        %1409 = vmatpush.xpose.msra.mxu0 0.0
        %1410 = vmatpush.xpose.msra.mxu0 0.0
        %1411 = vmatpush.xpose.msra.mxu0 0.0
        %1412 = vmatpush.xpose.msra.mxu0 0.0
        %1413 = vmatpush.xpose.msra.mxu0 0.0
        %1414 = vmatpush.xpose.msra.mxu0 0.0
        %1415 = vmatpush.xpose.msra.mxu0 0.0
        %1416 = vmatpush.xpose.msra.mxu0 %v1399
        %1417 = vmatmul.f32.gmra.mxu0 %v1396
        %v1418 = vpop.f32.mrf.mxu0
        %v1419 = vadd.f32 0.0, %v1418
        %1420 = vdwg.mxu0
        %v1422 = vsel %vm1162, %v917, 0
        %v1425 = vsel %vm1162, %v1137, 0
        %1427 = vmatpush.xpose.msra.mxu0 0.0
        %1428 = vmatpush.xpose.msra.mxu0 0.0
        %1429 = vmatpush.xpose.msra.mxu0 0.0
        %1430 = vmatpush.xpose.msra.mxu0 0.0
        %1431 = vmatpush.xpose.msra.mxu0 0.0
        %1432 = vmatpush.xpose.msra.mxu0 0.0
        %1433 = vmatpush.xpose.msra.mxu0 0.0
        %1434 = vmatpush.xpose.msra.mxu0 0.0
        %1435 = vmatpush.xpose.msra.mxu0 0.0
        %1436 = vmatpush.xpose.msra.mxu0 0.0
        %1437 = vmatpush.xpose.msra.mxu0 0.0
        %1438 = vmatpush.xpose.msra.mxu0 0.0
        %1439 = vmatpush.xpose.msra.mxu0 0.0
        %1440 = vmatpush.xpose.msra.mxu0 0.0
        %1441 = vmatpush.xpose.msra.mxu0 0.0
        %1442 = vmatpush.xpose.msra.mxu0 %v1425
        %1443 = vmatmul.f32.gmra.mxu0 %v1422
        %v1444 = vpop.f32.mrf.mxu0
        %v1445 = vadd.f32 0.0, %v1444
        %1446 = vdwg.mxu0
        %v1448 = vsel %vm1162, %v919, 0
        %v1451 = vsel %vm1162, %v1139, 0
        %1453 = vmatpush.xpose.msra.mxu0 0.0
        %1454 = vmatpush.xpose.msra.mxu0 0.0
        %1455 = vmatpush.xpose.msra.mxu0 0.0
        %1456 = vmatpush.xpose.msra.mxu0 0.0
        %1457 = vmatpush.xpose.msra.mxu0 0.0
        %1458 = vmatpush.xpose.msra.mxu0 0.0
        %1459 = vmatpush.xpose.msra.mxu0 0.0
        %1460 = vmatpush.xpose.msra.mxu0 0.0
        %1461 = vmatpush.xpose.msra.mxu0 0.0
        %1462 = vmatpush.xpose.msra.mxu0 0.0
        %1463 = vmatpush.xpose.msra.mxu0 0.0
        %1464 = vmatpush.xpose.msra.mxu0 0.0
        %1465 = vmatpush.xpose.msra.mxu0 0.0
        %1466 = vmatpush.xpose.msra.mxu0 0.0
        %1467 = vmatpush.xpose.msra.mxu0 0.0
        %1468 = vmatpush.xpose.msra.mxu0 %v1451
        %1469 = vmatmul.f32.gmra.mxu0 %v1448
        %v1470 = vpop.f32.mrf.mxu0
        %v1471 = vadd.f32 0.0, %v1470
        %1472 = vdwg.mxu0
        %v1474 = vsel %vm1162, %v921, 0
        %v1477 = vsel %vm1162, %v1141, 0
        %1479 = vmatpush.xpose.msra.mxu0 0.0
        %1480 = vmatpush.xpose.msra.mxu0 0.0
        %1481 = vmatpush.xpose.msra.mxu0 0.0
        %1482 = vmatpush.xpose.msra.mxu0 0.0
        %1483 = vmatpush.xpose.msra.mxu0 0.0
        %1484 = vmatpush.xpose.msra.mxu0 0.0
        %1485 = vmatpush.xpose.msra.mxu0 0.0
        %1486 = vmatpush.xpose.msra.mxu0 0.0
        %1487 = vmatpush.xpose.msra.mxu0 0.0
        %1488 = vmatpush.xpose.msra.mxu0 0.0
        %1489 = vmatpush.xpose.msra.mxu0 0.0
        %1490 = vmatpush.xpose.msra.mxu0 0.0
        %1491 = vmatpush.xpose.msra.mxu0 0.0
        %1492 = vmatpush.xpose.msra.mxu0 0.0
        %1493 = vmatpush.xpose.msra.mxu0 0.0
        %1494 = vmatpush.xpose.msra.mxu0 %v1477
        %1495 = vmatmul.f32.gmra.mxu0 %v1474
        %v1496 = vpop.f32.mrf.mxu0
        %v1497 = vadd.f32 0.0, %v1496
        %1498 = vdwg.mxu0
        %v1500 = vsel %vm1162, %v923, 0
        %v1503 = vsel %vm1162, %v1143, 0
        %1505 = vmatpush.xpose.msra.mxu0 0.0
        %1506 = vmatpush.xpose.msra.mxu0 0.0
        %1507 = vmatpush.xpose.msra.mxu0 0.0
        %1508 = vmatpush.xpose.msra.mxu0 0.0
        %1509 = vmatpush.xpose.msra.mxu0 0.0
        %1510 = vmatpush.xpose.msra.mxu0 0.0
        %1511 = vmatpush.xpose.msra.mxu0 0.0
        %1512 = vmatpush.xpose.msra.mxu0 0.0
        %1513 = vmatpush.xpose.msra.mxu0 0.0
        %1514 = vmatpush.xpose.msra.mxu0 0.0
        %1515 = vmatpush.xpose.msra.mxu0 0.0
        %1516 = vmatpush.xpose.msra.mxu0 0.0
        %1517 = vmatpush.xpose.msra.mxu0 0.0
        %1518 = vmatpush.xpose.msra.mxu0 0.0
        %1519 = vmatpush.xpose.msra.mxu0 0.0
        %1520 = vmatpush.xpose.msra.mxu0 %v1503
        %1521 = vmatmul.f32.gmra.mxu0 %v1500
        %v1522 = vpop.f32.mrf.mxu0
        %v1523 = vadd.f32 0.0, %v1522
        %1524 = vdwg.mxu0
        %v1525 = vsel %vm1162, %v1393, -inf
        %1526 = vmax.xlane.f32.xlu0 %v1525
        %v1527 = vpop.xlane.xlu0 %1526
        %v1528 = vsel %vm1162, %v1419, -inf
        %1529 = vmax.xlane.f32.xlu0 %v1528
        %v1530 = vpop.xlane.xlu0 %1529
        %v1531 = vsel %vm1162, %v1445, -inf
        %1532 = vmax.xlane.f32.xlu0 %v1531
        %v1533 = vpop.xlane.xlu0 %1532
        %v1534 = vsel %vm1162, %v1471, -inf
        %1535 = vmax.xlane.f32.xlu0 %v1534
        %v1536 = vpop.xlane.xlu0 %1535
        %v1537 = vsel %vm1162, %v1497, -inf
        %1538 = vmax.xlane.f32.xlu0 %v1537
        %v1539 = vpop.xlane.xlu0 %1538
        %v1540 = vsel %vm1162, %v1523, -inf
        %1541 = vmax.xlane.f32.xlu0 %v1540
        %v1542 = vpop.xlane.xlu0 %1541
        %v1543 = vsub.f32 %v1393, %v1527
        %v1544 = vsub.f32 %v1419, %v1530
        %v1545 = vsub.f32 %v1445, %v1533
        %v1546 = vsub.f32 %v1471, %v1536
        %v1547 = vsub.f32 %v1497, %v1539
        %v1548 = vsub.f32 %v1523, %v1542
        %v1549 = vmul.f32 %v1543, 1.442695
        %v1550 = vpow.pop %v1549
        %v1551 = vmul.f32 %v1544, 1.442695
        %v1552 = vpow.pop %v1551
        %v1553 = vmul.f32 %v1545, 1.442695
        %v1554 = vpow.pop %v1553
        %v1555 = vmul.f32 %v1546, 1.442695
        %v1556 = vpow.pop %v1555
        %v1557 = vmul.f32 %v1547, 1.442695
        %v1558 = vpow.pop %v1557
        %v1559 = vmul.f32 %v1548, 1.442695
        %v1560 = vpow.pop %v1559
        %v1561 = vsel %vm1162, %v1550, 0.0
        %1562 = vadd.xlane.f32.xlu0 %v1561
        %v1563 = vpop.xlane.xlu0 %1562
        %v1564 = vsel %vm1162, %v1552, 0.0
        %1565 = vadd.xlane.f32.xlu0 %v1564
        %v1566 = vpop.xlane.xlu0 %1565
        %v1567 = vsel %vm1162, %v1554, 0.0
        %1568 = vadd.xlane.f32.xlu0 %v1567
        %v1569 = vpop.xlane.xlu0 %1568
        %v1570 = vsel %vm1162, %v1556, 0.0
        %1571 = vadd.xlane.f32.xlu0 %v1570
        %v1572 = vpop.xlane.xlu0 %1571
        %v1573 = vsel %vm1162, %v1558, 0.0
        %1574 = vadd.xlane.f32.xlu0 %v1573
        %v1575 = vpop.xlane.xlu0 %1574
        %v1576 = vsel %vm1162, %v1560, 0.0
        %1577 = vadd.xlane.f32.xlu0 %v1576
        %v1578 = vpop.xlane.xlu0 %1577
        %v1579 = vrcp.pop %v1563
        %v1580 = vmul.f32 %v1563, %v1579
        %v1581 = vsub.f32 1.0, %v1580
        %v1582 = vmul.f32 %v1579, %v1581
        %v1583 = vadd.f32 %v1579, %v1582
        %vm1584 = vweird.f32 %v1563
        %vm1585 = vweird.f32 %v1579
        %vm1586 = vmor %vm1584, %vm1585
        %v1587 = vsel %vm1586, %v1579, %v1583
        %v1588 = vand.u32 2147483647, %v1563
        %vm1589 = vcmp.eq.f32.partialorder %v1588, 8.507059e+37
        %v1590 = vand.u32 %v1563, 2147483648
        %v1591 = vor.u32 1.1754944e-38, %v1590
        %v1592 = vsel %vm1589, %v1591, %v1587
        %v1593 = vmul.f32 %v1550, %v1592
        %v1594 = vrcp.pop %v1566
        %v1595 = vmul.f32 %v1566, %v1594
        %v1596 = vsub.f32 1.0, %v1595
        %v1597 = vmul.f32 %v1594, %v1596
        %v1598 = vadd.f32 %v1594, %v1597
        %vm1599 = vweird.f32 %v1566
        %vm1600 = vweird.f32 %v1594
        %vm1601 = vmor %vm1599, %vm1600
        %v1602 = vsel %vm1601, %v1594, %v1598
        %v1603 = vand.u32 2147483647, %v1566
        %vm1604 = vcmp.eq.f32.partialorder %v1603, 8.507059e+37
        %v1605 = vand.u32 %v1566, 2147483648
        %v1606 = vor.u32 1.1754944e-38, %v1605
        %v1607 = vsel %vm1604, %v1606, %v1602
        %v1608 = vmul.f32 %v1552, %v1607
        %v1609 = vrcp.pop %v1569
        %v1610 = vmul.f32 %v1569, %v1609
        %v1611 = vsub.f32 1.0, %v1610
        %v1612 = vmul.f32 %v1609, %v1611
        %v1613 = vadd.f32 %v1609, %v1612
        %vm1614 = vweird.f32 %v1569
        %vm1615 = vweird.f32 %v1609
        %vm1616 = vmor %vm1614, %vm1615
        %v1617 = vsel %vm1616, %v1609, %v1613
        %v1618 = vand.u32 2147483647, %v1569
        %vm1619 = vcmp.eq.f32.partialorder %v1618, 8.507059e+37
        %v1620 = vand.u32 %v1569, 2147483648
        %v1621 = vor.u32 1.1754944e-38, %v1620
        %v1622 = vsel %vm1619, %v1621, %v1617
        %v1623 = vmul.f32 %v1554, %v1622
        %v1624 = vrcp.pop %v1572
        %v1625 = vmul.f32 %v1572, %v1624
        %v1626 = vsub.f32 1.0, %v1625
        %v1627 = vmul.f32 %v1624, %v1626
        %v1628 = vadd.f32 %v1624, %v1627
        %vm1629 = vweird.f32 %v1572
        %vm1630 = vweird.f32 %v1624
        %vm1631 = vmor %vm1629, %vm1630
        %v1632 = vsel %vm1631, %v1624, %v1628
        %v1633 = vand.u32 2147483647, %v1572
        %vm1634 = vcmp.eq.f32.partialorder %v1633, 8.507059e+37
        %v1635 = vand.u32 %v1572, 2147483648
        %v1636 = vor.u32 1.1754944e-38, %v1635
        %v1637 = vsel %vm1634, %v1636, %v1632
        %v1638 = vmul.f32 %v1556, %v1637
        %v1639 = vrcp.pop %v1575
        %v1640 = vmul.f32 %v1575, %v1639
        %v1641 = vsub.f32 1.0, %v1640
        %v1642 = vmul.f32 %v1639, %v1641
        %v1643 = vadd.f32 %v1639, %v1642
        %vm1644 = vweird.f32 %v1575
        %vm1645 = vweird.f32 %v1639
        %vm1646 = vmor %vm1644, %vm1645
        %v1647 = vsel %vm1646, %v1639, %v1643
        %v1648 = vand.u32 2147483647, %v1575
        %vm1649 = vcmp.eq.f32.partialorder %v1648, 8.507059e+37
        %v1650 = vand.u32 %v1575, 2147483648
        %v1651 = vor.u32 1.1754944e-38, %v1650
        %v1652 = vsel %vm1649, %v1651, %v1647
        %v1653 = vmul.f32 %v1558, %v1652
        %v1654 = vrcp.pop %v1578
        %v1655 = vmul.f32 %v1578, %v1654
        %v1656 = vsub.f32 1.0, %v1655
        %v1657 = vmul.f32 %v1654, %v1656
        %v1658 = vadd.f32 %v1654, %v1657
        %vm1659 = vweird.f32 %v1578
        %vm1660 = vweird.f32 %v1654
        %vm1661 = vmor %vm1659, %vm1660
        %v1662 = vsel %vm1661, %v1654, %v1658
        %v1663 = vand.u32 2147483647, %v1578
        %vm1664 = vcmp.eq.f32.partialorder %v1663, 8.507059e+37
        %v1665 = vand.u32 %v1578, 2147483648
        %v1666 = vor.u32 1.1754944e-38, %v1665
        %v1667 = vsel %vm1664, %v1666, %v1662
        %v1668 = vmul.f32 %v1560, %v1667
        %v1670 = vsel %vm1162, %v1593, 0
        %1672 = vmatpush.msra.mxu0 0.0
        %1673 = vmatpush.msra.mxu0 0.0
        %1674 = vmatpush.msra.mxu0 0.0
        %1675 = vmatpush.msra.mxu0 0.0
        %1676 = vmatpush.msra.mxu0 0.0
        %1677 = vmatpush.msra.mxu0 0.0
        %1678 = vmatpush.msra.mxu0 0.0
        %1679 = vmatpush.msra.mxu0 0.0
        %1680 = vmatpush.msra.mxu0 0.0
        %1681 = vmatpush.msra.mxu0 0.0
        %1682 = vmatpush.msra.mxu0 0.0
        %1683 = vmatpush.msra.mxu0 0.0
        %1684 = vmatpush.msra.mxu0 0.0
        %1685 = vmatpush.msra.mxu0 0.0
        %1686 = vmatpush.msra.mxu0 0.0
        %1687 = vmatpush.msra.mxu0 %v1358
        %1688 = vmatmul.f32.gmra.mxu0 %v1670
        %v1689 = vpop.f32.mrf.mxu0
        %v1690 = vadd.f32 0.0, %v1689
        %1691 = vdwg.mxu0
        %v1693 = vsel %vm1162, %v1608, 0
        %1695 = vmatpush.msra.mxu0 0.0
        %1696 = vmatpush.msra.mxu0 0.0
        %1697 = vmatpush.msra.mxu0 0.0
        %1698 = vmatpush.msra.mxu0 0.0
        %1699 = vmatpush.msra.mxu0 0.0
        %1700 = vmatpush.msra.mxu0 0.0
        %1701 = vmatpush.msra.mxu0 0.0
        %1702 = vmatpush.msra.mxu0 0.0
        %1703 = vmatpush.msra.mxu0 0.0
        %1704 = vmatpush.msra.mxu0 0.0
        %1705 = vmatpush.msra.mxu0 0.0
        %1706 = vmatpush.msra.mxu0 0.0
        %1707 = vmatpush.msra.mxu0 0.0
        %1708 = vmatpush.msra.mxu0 0.0
        %1709 = vmatpush.msra.mxu0 0.0
        %1710 = vmatpush.msra.mxu0 %v1360
        %1711 = vmatmul.f32.gmra.mxu0 %v1693
        %v1712 = vpop.f32.mrf.mxu0
        %v1713 = vadd.f32 0.0, %v1712
        %1714 = vdwg.mxu0
        %v1716 = vsel %vm1162, %v1623, 0
        %1718 = vmatpush.msra.mxu0 0.0
        %1719 = vmatpush.msra.mxu0 0.0
        %1720 = vmatpush.msra.mxu0 0.0
        %1721 = vmatpush.msra.mxu0 0.0
        %1722 = vmatpush.msra.mxu0 0.0
        %1723 = vmatpush.msra.mxu0 0.0
        %1724 = vmatpush.msra.mxu0 0.0
        %1725 = vmatpush.msra.mxu0 0.0
        %1726 = vmatpush.msra.mxu0 0.0
        %1727 = vmatpush.msra.mxu0 0.0
        %1728 = vmatpush.msra.mxu0 0.0
        %1729 = vmatpush.msra.mxu0 0.0
        %1730 = vmatpush.msra.mxu0 0.0
        %1731 = vmatpush.msra.mxu0 0.0
        %1732 = vmatpush.msra.mxu0 0.0
        %1733 = vmatpush.msra.mxu0 %v1362
        %1734 = vmatmul.f32.gmra.mxu0 %v1716
        %v1735 = vpop.f32.mrf.mxu0
        %v1736 = vadd.f32 0.0, %v1735
        %1737 = vdwg.mxu0
        %v1739 = vsel %vm1162, %v1638, 0
        %1741 = vmatpush.msra.mxu0 0.0
        %1742 = vmatpush.msra.mxu0 0.0
        %1743 = vmatpush.msra.mxu0 0.0
        %1744 = vmatpush.msra.mxu0 0.0
        %1745 = vmatpush.msra.mxu0 0.0
        %1746 = vmatpush.msra.mxu0 0.0
        %1747 = vmatpush.msra.mxu0 0.0
        %1748 = vmatpush.msra.mxu0 0.0
        %1749 = vmatpush.msra.mxu0 0.0
        %1750 = vmatpush.msra.mxu0 0.0
        %1751 = vmatpush.msra.mxu0 0.0
        %1752 = vmatpush.msra.mxu0 0.0
        %1753 = vmatpush.msra.mxu0 0.0
        %1754 = vmatpush.msra.mxu0 0.0
        %1755 = vmatpush.msra.mxu0 0.0
        %1756 = vmatpush.msra.mxu0 %v1364
        %1757 = vmatmul.f32.gmra.mxu0 %v1739
        %v1758 = vpop.f32.mrf.mxu0
        %v1759 = vadd.f32 0.0, %v1758
        %1760 = vdwg.mxu0
        %v1762 = vsel %vm1162, %v1653, 0
        %1764 = vmatpush.msra.mxu0 0.0
        %1765 = vmatpush.msra.mxu0 0.0
        %1766 = vmatpush.msra.mxu0 0.0
        %1767 = vmatpush.msra.mxu0 0.0
        %1768 = vmatpush.msra.mxu0 0.0
        %1769 = vmatpush.msra.mxu0 0.0
        %1770 = vmatpush.msra.mxu0 0.0
        %1771 = vmatpush.msra.mxu0 0.0
        %1772 = vmatpush.msra.mxu0 0.0
        %1773 = vmatpush.msra.mxu0 0.0
        %1774 = vmatpush.msra.mxu0 0.0
        %1775 = vmatpush.msra.mxu0 0.0
        %1776 = vmatpush.msra.mxu0 0.0
        %1777 = vmatpush.msra.mxu0 0.0
        %1778 = vmatpush.msra.mxu0 0.0
        %1779 = vmatpush.msra.mxu0 %v1366
        %1780 = vmatmul.f32.gmra.mxu0 %v1762
        %v1781 = vpop.f32.mrf.mxu0
        %v1782 = vadd.f32 0.0, %v1781
        %1783 = vdwg.mxu0
        %v1785 = vsel %vm1162, %v1668, 0
        %1787 = vmatpush.msra.mxu0 0.0
        %1788 = vmatpush.msra.mxu0 0.0
        %1789 = vmatpush.msra.mxu0 0.0
        %1790 = vmatpush.msra.mxu0 0.0
        %1791 = vmatpush.msra.mxu0 0.0
        %1792 = vmatpush.msra.mxu0 0.0
        %1793 = vmatpush.msra.mxu0 0.0
        %1794 = vmatpush.msra.mxu0 0.0
        %1795 = vmatpush.msra.mxu0 0.0
        %1796 = vmatpush.msra.mxu0 0.0
        %1797 = vmatpush.msra.mxu0 0.0
        %1798 = vmatpush.msra.mxu0 0.0
        %1799 = vmatpush.msra.mxu0 0.0
        %1800 = vmatpush.msra.mxu0 0.0
        %1801 = vmatpush.msra.mxu0 0.0
        %1802 = vmatpush.msra.mxu0 %v1368
        %1803 = vmatmul.f32.gmra.mxu0 %v1785
        %v1804 = vpop.f32.mrf.mxu0
        %v1805 = vadd.f32 0.0, %v1804
        %1806 = vdwg.mxu0
        %v1807 = vrot.slane %v1736, 4
        %v1808 = vsel %vm720, %v1807, %v1690
        %v1809 = vrot.slane %v1690, 4
        %v1810 = vsel %vm720, %v1736, %v1809
        %v1812 = vunpack.c.l.s4 1983009808
        %v1813 = vunpack.c.0.s8 %v1812
        %v1814 = vperm.slane %v1808, %v1813
        %v1816 = vunpack.c.l.s4 1983009808
        %v1817 = vunpack.c.0.s8 %v1816
        %v1818 = vperm.slane %v1810, %v1817
        %v1819 = vrot.slane %v1759, 4
        %v1820 = vsel %vm720, %v1819, %v1713
        %v1821 = vrot.slane %v1713, 4
        %v1822 = vsel %vm720, %v1759, %v1821
        %v1824 = vunpack.c.l.s4 1983009808
        %v1825 = vunpack.c.0.s8 %v1824
        %v1826 = vperm.slane %v1820, %v1825
        %v1828 = vunpack.c.l.s4 1983009808
        %v1829 = vunpack.c.0.s8 %v1828
        %v1830 = vperm.slane %v1822, %v1829
        %v1831 = vrot.slane %v1782, 4
        %v1832 = vsel %vm720, 0.0, %v1831
        %v1834 = vunpack.c.l.s4 1983009808
        %v1835 = vunpack.c.0.s8 %v1834
        %v1836 = vperm.slane %v1782, %v1835
        %v1838 = vunpack.c.l.s4 1983009808
        %v1839 = vunpack.c.0.s8 %v1838
        %v1840 = vperm.slane %v1832, %v1839
        %v1841 = vrot.slane %v1805, 4
        %v1842 = vsel %vm720, 0.0, %v1841
        %v1844 = vunpack.c.l.s4 1983009808
        %v1845 = vunpack.c.0.s8 %v1844
        %v1846 = vperm.slane %v1805, %v1845
        %v1848 = vunpack.c.l.s4 1983009808
        %v1849 = vunpack.c.0.s8 %v1848
        %v1850 = vperm.slane %v1842, %v1849
        %v1851 = vrot.slane %v1826, 4
        %v1852 = vsel %vm720, %v1851, %v1814
        %v1853 = vrot.slane %v1814, 4
        %v1854 = vsel %vm720, %v1826, %v1853
        %v1856 = vunpack.c.l.s4 1934713408
        %v1857 = vunpack.c.0.s8 %v1856
        %v1858 = vperm.slane %v1852, %v1857
        %v1860 = vunpack.c.l.s4 1934713408
        %v1861 = vunpack.c.0.s8 %v1860
        %v1862 = vperm.slane %v1854, %v1861
        %v1863 = vrot.slane %v1830, 4
        %v1864 = vsel %vm720, %v1863, %v1818
        %v1865 = vrot.slane %v1818, 4
        %v1866 = vsel %vm720, %v1830, %v1865
        %v1868 = vunpack.c.l.s4 1934713408
        %v1869 = vunpack.c.0.s8 %v1868
        %v1870 = vperm.slane %v1864, %v1869
        %v1872 = vunpack.c.l.s4 1934713408
        %v1873 = vunpack.c.0.s8 %v1872
        %v1874 = vperm.slane %v1866, %v1873
        %v1875 = vrot.slane %v1846, 4
        %v1876 = vsel %vm720, %v1875, %v1836
        %v1877 = vrot.slane %v1836, 4
        %v1878 = vsel %vm720, %v1846, %v1877
        %v1880 = vunpack.c.l.s4 1934713408
        %v1881 = vunpack.c.0.s8 %v1880
        %v1882 = vperm.slane %v1876, %v1881
        %v1884 = vunpack.c.l.s4 1934713408
        %v1885 = vunpack.c.0.s8 %v1884
        %v1886 = vperm.slane %v1878, %v1885
        %v1887 = vrot.slane %v1850, 4
        %v1888 = vsel %vm720, %v1887, %v1840
        %v1889 = vrot.slane %v1840, 4
        %v1890 = vsel %vm720, %v1850, %v1889
        %v1892 = vunpack.c.l.s4 1934713408
        %v1893 = vunpack.c.0.s8 %v1892
        %v1894 = vperm.slane %v1888, %v1893
        %v1896 = vunpack.c.l.s4 1934713408
        %v1897 = vunpack.c.0.s8 %v1896
        %v1898 = vperm.slane %v1890, %v1897
        %v1899 = vrot.slane %v1882, 4
        %v1900 = vsel %vm720, %v1899, %v1858
        %v1901 = vrot.slane %v1858, 4
        %v1902 = vsel %vm720, %v1882, %v1901
        %v1903 = vrot.slane %v1886, 4
        %v1904 = vsel %vm720, %v1903, %v1862
        %v1905 = vrot.slane %v1862, 4
        %v1906 = vsel %vm720, %v1886, %v1905
        %v1907 = vrot.slane %v1894, 4
        %v1908 = vsel %vm720, %v1907, %v1870
        %v1909 = vrot.slane %v1870, 4
        %v1910 = vsel %vm720, %v1894, %v1909
        %v1911 = vrot.slane %v1898, 4
        %v1912 = vsel %vm720, %v1911, %v1874
        %v1913 = vrot.slane %v1874, 4
        %v1914 = vsel %vm720, %v1898, %v1913
        %v1915 = vrot.slane %v1904, 4
        %v1916 = vsel %vm720, %v1915, %v1900
        %v1917 = vrot.slane %v1900, 4
        %v1918 = vsel %vm720, %v1904, %v1917
        %v1920 = vunpack.c.l.s4 1983009808
        %v1921 = vunpack.c.0.s8 %v1920
        %v1922 = vperm.slane %v1916, %v1921
        %v1924 = vunpack.c.l.s4 1983009808
        %v1925 = vunpack.c.0.s8 %v1924
        %v1926 = vperm.slane %v1918, %v1925
        %v1927 = vrot.slane %v1906, 4
        %v1928 = vsel %vm720, %v1927, %v1902
        %v1929 = vrot.slane %v1902, 4
        %v1930 = vsel %vm720, %v1906, %v1929
        %v1932 = vunpack.c.l.s4 1983009808
        %v1933 = vunpack.c.0.s8 %v1932
        %v1934 = vperm.slane %v1928, %v1933
        %v1936 = vunpack.c.l.s4 1983009808
        %v1937 = vunpack.c.0.s8 %v1936
        %v1938 = vperm.slane %v1930, %v1937
        %v1939 = vrot.slane %v1912, 4
        %v1940 = vsel %vm720, %v1939, %v1908
        %v1941 = vrot.slane %v1908, 4
        %v1942 = vsel %vm720, %v1912, %v1941
        %v1944 = vunpack.c.l.s4 1983009808
        %v1945 = vunpack.c.0.s8 %v1944
        %v1946 = vperm.slane %v1940, %v1945
        %v1948 = vunpack.c.l.s4 1983009808
        %v1949 = vunpack.c.0.s8 %v1948
        %v1950 = vperm.slane %v1942, %v1949
        %v1951 = vrot.slane %v1914, 4
        %v1952 = vsel %vm720, %v1951, %v1910
        %v1953 = vrot.slane %v1910, 4
        %v1954 = vsel %vm720, %v1914, %v1953
        %v1956 = vunpack.c.l.s4 1983009808
        %v1957 = vunpack.c.0.s8 %v1956
        %v1958 = vperm.slane %v1952, %v1957
        %v1960 = vunpack.c.l.s4 1983009808
        %v1961 = vunpack.c.0.s8 %v1960
        %v1962 = vperm.slane %v1954, %v1961
        %v1963 = vrot.slane %v1934, 4
        %v1964 = vsel %vm720, %v1963, %v1922
        %v1965 = vrot.slane %v1922, 4
        %v1966 = vsel %vm720, %v1934, %v1965
        %v1968 = vunpack.c.l.s4 1934713408
        %v1969 = vunpack.c.0.s8 %v1968
        %v1970 = vperm.slane %v1964, %v1969
        %v1972 = vunpack.c.l.s4 1934713408
        %v1973 = vunpack.c.0.s8 %v1972
        %v1974 = vperm.slane %v1966, %v1973
        %v1975 = vrot.slane %v1938, 4
        %v1976 = vsel %vm720, %v1975, %v1926
        %v1978 = vunpack.c.l.s4 1934713408
        %v1979 = vunpack.c.0.s8 %v1978
        %v1980 = vperm.slane %v1976, %v1979
        %v1981 = vrot.slane %v1958, 4
        %v1982 = vsel %vm720, %v1981, %v1946
        %v1983 = vrot.slane %v1946, 4
        %v1984 = vsel %vm720, %v1958, %v1983
        %v1986 = vunpack.c.l.s4 1934713408
        %v1987 = vunpack.c.0.s8 %v1986
        %v1988 = vperm.slane %v1982, %v1987
        %v1990 = vunpack.c.l.s4 1934713408
        %v1991 = vunpack.c.0.s8 %v1990
        %v1992 = vperm.slane %v1984, %v1991
        %v1993 = vrot.slane %v1962, 4
        %v1994 = vsel %vm720, %v1993, %v1950
        %v1996 = vunpack.c.l.s4 1934713408
        %v1997 = vunpack.c.0.s8 %v1996
        %v1998 = vperm.slane %v1994, %v1997
        %v1999 = vrot.slane %v1988, 4
        %v2000 = vsel %vm720, %v1999, %v1970
        %v2001 = vrot.slane %v1970, 4
        %v2002 = vsel %vm720, %v1988, %v2001
        %v2003 = vrot.slane %v1992, 4
        %v2004 = vsel %vm720, %v2003, %v1974
        %v2005 = vrot.slane %v1974, 4
        %v2006 = vsel %vm720, %v1992, %v2005
        %v2007 = vrot.slane %v1998, 4
        %v2008 = vsel %vm720, %v2007, %v1980
        %v2009 = vrot.slane %v1980, 4
        %v2010 = vsel %vm720, %v1998, %v2009
        %2012 = vrot.lane.b32.xlu0 %v2002, 24
        %v2013 = vpop.permute.xlu0 %2012
        %2016 = vrot.lane.b32.xlu0 %v2004, 48
        %v2017 = vpop.permute.xlu0 %2016
        %2020 = vrot.lane.b32.xlu0 %v2006, 72
        %v2021 = vpop.permute.xlu0 %2020
        %2024 = vrot.lane.b32.xlu0 %v2008, 96
        %v2025 = vpop.permute.xlu0 %2024
        %2028 = vrot.lane.b32.xlu0 %v2010, 120
        %v2029 = vpop.permute.xlu0 %2028
        %vm2031 = vcmask 195584
        %v2032 = vsel %vm2031, %v2000, %v2013
        %v2033 = vsel %vm579, %v2032, %v2017
        %vm2034 = vcmask 588800
        %v2035 = vsel %vm2034, %v2033, %v2021
        %vm2036 = vcmask 785408
        %v2037 = vsel %vm2036, %v2035, %v2025
        %vm2038 = vcmask 982016
        %v2039 = vsel %vm2038, %v2037, %v2029
        %v2040 = vld [vmem:[%s551] sm:$0xff]
        %v2041 = vld [vmem:[%s551 + $0x8] sm:$0xff]
        %v2042 = vld [vmem:[%s551 + $0x10] sm:$0xff]
        %v2043 = vld [vmem:[%s551 + $0x18] sm:$0xff]
        %v2044 = vld [vmem:[%s551 + $0x20] sm:$0xff]
        %v2045 = vld [vmem:[%s551 + $0x28] sm:$0xff]
        %v2046 = vld [vmem:[%s551 + $0x30] sm:$0xff]
        %v2047 = vld [vmem:[%s551 + $0x38] sm:$0xff]
        %v2048 = vld [vmem:[%s551 + $0x40] sm:$0xff]
        %v2049 = vld [vmem:[%s551 + $0x48] sm:$0xff]
        %v2050 = vld [vmem:[%s551 + $0x50] sm:$0xff]
        %v2051 = vld [vmem:[%s551 + $0x58] sm:$0xff]
        %v2052 = vld [vmem:[%s551 + $0x60] sm:$0xff]
        %v2053 = vld [vmem:[%s551 + $0x68] sm:$0xff]
        %v2054 = vld [vmem:[%s551 + $0x70] sm:$0xff]
        %v2055 = vld [vmem:[%s551 + $0x78] sm:$0xff]
        %v2056 = vld [vmem:[%s551 + $0x80] sm:$0xff]
        %v2057 = vld [vmem:[%s551 + $0x88] sm:$0xff]
        %v2058 = vld [vmem:[%s554] sm:$0x1]
        %v2060 = vperm.slane %v2058, 0
        %vm2062 = vcmask 130048
        %v2063 = vsel %vm2062, %v2029, 0
        %2065 = vmatpush.msra.mxu0 %v2055
        %2066 = vmatpush.msra.mxu0 %v2054
        %2067 = vmatpush.msra.mxu0 %v2053
        %2068 = vmatpush.msra.mxu0 %v2052
        %2069 = vmatpush.msra.mxu0 %v2051
        %2070 = vmatpush.msra.mxu0 %v2050
        %2071 = vmatpush.msra.mxu0 %v2049
        %2072 = vmatpush.msra.mxu0 %v2048
        %2073 = vmatpush.msra.mxu0 %v2047
        %2074 = vmatpush.msra.mxu0 %v2046
        %2075 = vmatpush.msra.mxu0 %v2045
        %2076 = vmatpush.msra.mxu0 %v2044
        %2077 = vmatpush.msra.mxu0 %v2043
        %2078 = vmatpush.msra.mxu0 %v2042
        %2079 = vmatpush.msra.mxu0 %v2041
        %2080 = vmatpush.msra.mxu0 %v2040
        %2081 = vmatmul.f32.gmra.mxu0 %v2039
        %v2082 = vpop.f32.mrf.mxu0
        %v2083 = vadd.f32 %v2060, %v2082
        %2084 = vdwg.mxu0
        %2085 = vmatpush.msra.mxu0 0.0
        %2086 = vmatpush.msra.mxu0 0.0
        %2087 = vmatpush.msra.mxu0 0.0
        %2088 = vmatpush.msra.mxu0 0.0
        %2089 = vmatpush.msra.mxu0 0.0
        %2090 = vmatpush.msra.mxu0 0.0
        %2091 = vmatpush.msra.mxu0 0.0
        %2092 = vmatpush.msra.mxu0 0.0
        %2093 = vmatpush.msra.mxu0 0.0
        %2094 = vmatpush.msra.mxu0 0.0
        %2095 = vmatpush.msra.mxu0 0.0
        %2096 = vmatpush.msra.mxu0 0.0
        %2097 = vmatpush.msra.mxu0 0.0
        %2098 = vmatpush.msra.mxu0 0.0
        %2099 = vmatpush.msra.mxu0 %v2057
        %2100 = vmatpush.msra.mxu0 %v2056
        %2101 = vmatmul.f32.gmra.mxu0 %v2063
        %v2102 = vpop.f32.mrf.mxu0
        %v2103 = vadd.f32 %v2083, %v2102
        %2104 = vdwg.mxu0
        %vm2105 = vcmp.ge.f32.partialorder %v2103, 0.0
        %v2106 = vmul.f32 %v2103, 0.01
        %v2107 = vsel %vm2105, %v2103, %v2106
        %v2108 = vadd.f32 %v568, %v2107
        %v2109 = vsel %vm579, %v2108, 0.0
        %2110 = vadd.xlane.f32.xlu0 %v2109
        %v2111 = vpop.xlane.xlu0 %2110
        %v2112 = vrcp.pop 48.0
        %v2113 = vmul.f32 48.0, %v2112
        %v2114 = vsub.f32 1.0, %v2113
        %v2115 = vmul.f32 %v2112, %v2114
        %v2116 = vadd.f32 %v2112, %v2115
        %vm2117 = vweird.f32 %v2112
        %v2118 = vsel %vm2117, %v2112, %v2116
        %v2119 = vmul.f32 %v2111, %v2118
        %v2120 = vsub.f32 %v2108, %v2119
        %v2121 = vmul.f32 %v2120, %v2120
        %v2122 = vsel %vm579, %v2121, 0.0
        %2123 = vadd.xlane.f32.xlu0 %v2122
        %v2124 = vpop.xlane.xlu0 %2123
        %v2125 = vmul.f32 %v2124, %v2118
        %v2126 = vadd.f32 %v2125, 1e-05
        %v2127 = vrsqrt.pop %v2126
        %v2128 = vmul.f32 %v2127, %v2126
        %v2129 = vmul.f32 %v2128, %v2127
        %v2130 = vmul.f32 0.5, %v2129
        %v2131 = vsub.f32 1.5, %v2130
        %v2132 = vmul.f32 %v2127, %v2131
        %vm2133 = vweird.f32 %v2126
        %vm2134 = vweird.f32 %v2127
        %vm2135 = vmor %vm2133, %vm2134
        %v2136 = vsel %vm2135, %v2127, %v2132
        %v2137 = vmul.f32 %v2120, %v2136
        %v2138 = vld [vmem:[%s557] sm:$0x1]
        %v2140 = vperm.slane %v2138, 0
        %v2142 = vmul.f32 %v2137, %v2140
        %v2143 = vld [vmem:[%s560] sm:$0x1]
        %v2145 = vperm.slane %v2143, 0
        %v2147 = vadd.f32 %v2142, %v2145
        %2148 = vst.msk [vmem:[#allocation2] sm:$0xff] %vm579, %v2147
        %p2149 = scmp.eq.s32.totalorder %s30, 1
        // Predicated region
        $region69: #{tpu_custom_call.1} parent=63 // pred_check
          %p2150 = pneg %p2149
        $region70: #{tpu_custom_call.1} parent=63 // pred_check_branch
          %2152 = sbr.rel (%p2150) target = $region72
        $region71: #{tpu_custom_call.1} parent=63 // pred_region
          %v2153 = vld [vmem:[#allocation2] sm:$0xff]
          %2154 = vst.msk [vmem:[%s517] sm:$0xff] %vm579, %v2153
        $region72: #{tpu_custom_call.1} parent=63 // pred_fallthru
          _
        %s2155 = sand.u32 %s331, 1
        %s2156 = scalar_lea.sflag [#allocation4], %s2155
        %s2157 = sand.u32 %s331, 1
        %s2158 = smul.addr %s2157, 8
        %s2159 = scalar_lea.vmem [#allocation3], %s2158
        // Predicated region
        $region73: #{tpu_custom_call.1} parent=63 // pred_check
          %p2160 = pneg %p341
        $region74: #{tpu_custom_call.1} parent=63 // pred_check_branch
          %2162 = sbr.rel (%p2160) target = $region76
        $region75: #{tpu_custom_call.1} parent=63 // pred_region
          %2164 = vsyncadd %s2156, 0
          %s2165 = smul.addr %s29, 8
          %s2166 = scalar_lea.hbm %s11, %s2165
          %s2168 = sshll.u32 %s2159, 4
          %s2169 = int_to_ptr.vmem [resolvable:$true] %s2168
          %s2170 = sshll.u32 %s2166, 4
          %s2171 = int_to_ptr.hbm [resolvable:$true] %s2170
          %2173 = dma.vmem_to_hbm [thread:$0]  %s2169, 128, %s2171, %s2156
        $region76: #{tpu_custom_call.1} parent=63 // pred_fallthru
          _
      $region64: #{tpu_custom_call.1} parent=5 // pred_fallthru
        _
      %p2174 = scmp.le.s32.totalorder 2, %s20
      // Predicated region
      $region77: #{tpu_custom_call.1} parent=5 // pred_check
        %p2175 = pneg %p2174
      $region78: #{tpu_custom_call.1} parent=5 // pred_check_branch
        %2177 = sbr.rel (%p2175) target = $region80
      $region79: #{tpu_custom_call.1} parent=5 // pred_region
        %s2178 = ssub.s32 %s20, 2
        // Predicated region
        $region81: #{tpu_custom_call.1} parent=79 // pred_check
          %p2179 = pneg %p347
        $region82: #{tpu_custom_call.1} parent=79 // pred_check_branch
          %2181 = sbr.rel (%p2179) target = $region84
        $region83: #{tpu_custom_call.1} parent=79 // pred_region
          %s2182 = sand.u32 %s332, 1
          %s2183 = scalar_lea.sflag [#allocation4], %s2182
          %s2184 = sand.u32 %s332, 1
          %s2185 = smul.addr %s2184, 8
          %s2186 = scalar_lea.vmem [#allocation3], %s2185
          %2188 = dma.done %s2183, 128
        $region84: #{tpu_custom_call.1} parent=79 // pred_fallthru
          _
      $region80: #{tpu_custom_call.1} parent=5 // pred_fallthru
        _
    $region6: #{tpu_custom_call.1} parent=1 // loop_footer
      %s24 = sadd.s32 1, %s20
    $region7: #{tpu_custom_call.1} parent=1 // loop_footer_branch
      %19 = sbr.rel target = $region3
    $region8: #{tpu_custom_call.1} parent=1 // loop_exit
      _
    %2189 = vsyncpa [#allocation4], 1
    %s2190 = scalar_lea.sflag [#allocation4], 1
    %2191 = vsyncpa %s2190, 1

</llo_original>
